<compile_context>
chip_gen: v7x
topology: tpu7x:2x2x1
jax: 0.10.0
libtpu: 0.0.40
codegen_flags: <defaults>
</compile_context>

<pallas_src>
import jax
import jax.numpy as jnp
from jax.experimental import pallas as pl
from jax.experimental.pallas import tpu as pltpu


# ----------------------------------------------------------------------------
# Kernel
# ----------------------------------------------------------------------------
def _swiglu_mlp_kernel(x_ref, wg_ref, wu_ref, wd_ref, o_ref, acc_ref):
    """Grid = (token_tiles, intermediate_tiles); the I axis is the reduction."""
    j = pl.program_id(1)

    @pl.when(j == 0)
    def _init():
        acc_ref[...] = jnp.zeros_like(acc_ref)

    x = x_ref[...]                                             # (tm, H) bf16
    # Two MXU passes sharing the same LHS (identical FLOPs to a fused RHS,
    # but avoids building an interleaved weight copy in HBM every call).
    gate = jnp.dot(x, wg_ref[...], preferred_element_type=jnp.float32)
    up = jnp.dot(x, wu_ref[...], preferred_element_type=jnp.float32)

    # SiLU(gate) * up in f32.  exp and the reciprocal go to the EUP slot
    # (approx rcp), keeping the VALU free for the multiplies.
    sig = pl.reciprocal(1.0 + jnp.exp(-gate), approx=True)
    h = gate * sig * up                                        # (tm, ti) f32

    acc_ref[...] += jnp.dot(h.astype(wd_ref.dtype), wd_ref[...],
                            preferred_element_type=jnp.float32)

    @pl.when(j == pl.num_programs(1) - 1)
    def _store():
        o_ref[...] = acc_ref[...].astype(o_ref.dtype)


# ----------------------------------------------------------------------------
# Tile selection / VMEM budgeting
# ----------------------------------------------------------------------------
def _round_up(x, m):
    return (x + m - 1) // m * m


def _vmem_capacity_bytes():
    try:
        info = pltpu.get_tpu_info()
        cap = getattr(info, "vmem_capacity_bytes", None)
        if cap:
            return int(cap)
    except Exception:
        pass
    return 64 << 20  # conservative (v7x per-TC VMEM)


def _vmem_estimate(tm, ti, H, itemsize):
    """Double-buffered tiles + resident f32 accumulator + f32 temporaries."""
    return (2 * tm * H * itemsize          # x tile
            + 2 * H * ti * itemsize        # gate weight tile
            + 2 * H * ti * itemsize        # up weight tile
            + 2 * ti * H * itemsize        # down weight tile
            + 2 * tm * H * itemsize        # output tile
            + tm * H * 4                   # f32 accumulator scratch
            + 3 * tm * ti * 4)             # f32 gate/up/h temporaries


def _ti_candidates(I):
    cands = [c for c in (2048, 1024, 512, 256, 128) if I % c == 0]
    return cands if cands else [I]


def _select_tiles(M, H, I, itemsize, tm=None, ti=None):
    """Pick (tm, ti) that fit ~80% of per-core VMEM, preferring large tm."""
    vmem_cap = _vmem_capacity_bytes()
    budget = int(vmem_cap * 0.80)

    tm_cap = max(128, _round_up(M, 128))
    tm_cands = ([tm] if tm is not None
                else [t for t in (1024, 512, 256, 128) if t <= tm_cap] or [128])
    if ti is not None:
        if I % ti != 0:
            raise ValueError(f"ti={ti} must divide intermediate size {I}")
        ti_cands = [ti]
    else:
        ti_cands = _ti_candidates(I)

    for t_m in tm_cands:
        for t_i in ti_cands:
            if _vmem_estimate(t_m, t_i, H, itemsize) <= budget:
                return t_m, t_i, vmem_cap
    # Fallback: smallest tiles even if over budget (user-forced / tiny VMEM).
    return tm_cands[-1], ti_cands[-1], vmem_cap


# ----------------------------------------------------------------------------
# Wrapper
# ----------------------------------------------------------------------------
def deepseek_v2_mlp(x, w_gate, w_up, w_down, *, tm=None, ti=None,
                    compute_dtype=jnp.bfloat16):
    """x: (B, S, H); w_gate/w_up: (H, I); w_down: (I, H) -> (B, S, H)."""
    B, S, H = x.shape
    I = w_gate.shape[1]
    out_dtype = x.dtype
    itemsize = jnp.dtype(compute_dtype).itemsize

    # bf16 operands (MXU full rate, half the weight DMA bytes); f32 accumulate.
    xc = x if x.dtype == compute_dtype else x.astype(compute_dtype)
    wg = w_gate if w_gate.dtype == compute_dtype else w_gate.astype(compute_dtype)
    wu = w_up if w_up.dtype == compute_dtype else w_up.astype(compute_dtype)
    wd = w_down if w_down.dtype == compute_dtype else w_down.astype(compute_dtype)

    M = B * S
    tm, ti, vmem_cap = _select_tiles(M, H, I, itemsize, tm=tm, ti=ti)
    nI = I // ti

    # No explicit padding of x: pl.cdiv grid + masked partial blocks handle the
    # ragged last token tile (garbage rows stay confined to their own rows and
    # are never written to the (M, H) output).
    x2d = xc.reshape(M, H)

    est = _vmem_estimate(tm, ti, H, itemsize)
    vmem_limit = int(min(max(est + (8 << 20), 32 << 20), vmem_cap - (4 << 20)))

    # TODO(synk): for decode-sized M (single token tile) on v7x, a second
    # parallel axis splitting w_down's output columns would engage both TCs.
    out2d = pl.pallas_call(
        _swiglu_mlp_kernel,
        out_shape=jax.ShapeDtypeStruct((M, H), out_dtype),
        grid_spec=pltpu.PrefetchScalarGridSpec(
            num_scalar_prefetch=0,
            grid=(pl.cdiv(M, tm), nI),
            in_specs=[
                pl.BlockSpec((tm, H), lambda i, j: (i, 0)),   # x tile
                pl.BlockSpec((H, ti), lambda i, j: (0, j)),   # gate weight tile
                pl.BlockSpec((H, ti), lambda i, j: (0, j)),   # up weight tile
                pl.BlockSpec((ti, H), lambda i, j: (j, 0)),   # down weight tile
            ],
            out_specs=pl.BlockSpec((tm, H), lambda i, j: (i, 0)),
            scratch_shapes=[pltpu.VMEM((tm, H), jnp.float32)],
        ),
        compiler_params=pltpu.CompilerParams(
            dimension_semantics=("parallel", "arbitrary"),
            vmem_limit_bytes=vmem_limit,
        ),
    )(x2d, wg, wu, wd)

    return out2d.reshape(B, S, H)


# ----------------------------------------------------------------------------
# Pure-JAX reference (mirrors the kernel's precision choices)
# ----------------------------------------------------------------------------
def _reference(x, w_gate, w_up, w_down, compute_dtype=jnp.bfloat16):
    xc = x.astype(compute_dtype)
    wg = w_gate.astype(compute_dtype)
    wu = w_up.astype(compute_dtype)
    wd = w_down.astype(compute_dtype)
    gate = jnp.einsum("bsh,hi->bsi", xc, wg, preferred_element_type=jnp.float32)
    up = jnp.einsum("bsh,hi->bsi", xc, wu, preferred_element_type=jnp.float32)
    h = gate * (1.0 / (1.0 + jnp.exp(-gate))) * up
    out = jnp.einsum("bsi,ih->bsh", h.astype(compute_dtype), wd,
                     preferred_element_type=jnp.float32)
    return out.astype(x.dtype)


if __name__ == "__main__":
    # Small but tile-exercising config: M = 2*250 = 500 tokens -> 2 token tiles
    # (second one partial/masked) x 4 intermediate tiles with tm=256, ti=256.
    batch, seq, hidden, intermediate = 2, 250, 256, 1024

    key = jax.random.PRNGKey(0)
    kx, kg, ku, kd = jax.random.split(key, 4)

    x = jax.random.normal(kx, (batch, seq, hidden),
                          dtype=jnp.float32).astype(jnp.bfloat16)
    # nn.Linear(in, out, bias=False).weight is (out, in); we store (in, out).
    scale_in = 1.0 / jnp.sqrt(hidden)
    scale_mid = 1.0 / jnp.sqrt(intermediate)
    w_gate = jax.random.uniform(kg, (hidden, intermediate), jnp.float32,
                                -scale_in, scale_in).astype(jnp.bfloat16)
    w_up = jax.random.uniform(ku, (hidden, intermediate), jnp.float32,
                              -scale_in, scale_in).astype(jnp.bfloat16)
    w_down = jax.random.uniform(kd, (intermediate, hidden), jnp.float32,
                                -scale_mid, scale_mid).astype(jnp.bfloat16)

    ref = _reference(x, w_gate, w_up, w_down)
    ref_f = ref.astype(jnp.float32)
    ref_max = jnp.max(jnp.abs(ref_f)) + 1e-6

    # Explicit tiles (exercises multi-tile grid + partial token block).
    out = deepseek_v2_mlp(x, w_gate, w_up, w_down, tm=256, ti=256)
    out = jax.block_until_ready(out)
    assert out.shape == (batch, seq, hidden)
    rel_err = jnp.max(jnp.abs(out.astype(jnp.float32) - ref_f)) / ref_max
    assert rel_err < 2e-2, f"mismatch vs reference (explicit tiles): rel {rel_err}"

    # Auto (VMEM-budget-aware) tile selection path.
    out_auto = deepseek_v2_mlp(x, w_gate, w_up, w_down)
    out_auto = jax.block_until_ready(out_auto)
    rel_err_auto = jnp.max(jnp.abs(out_auto.astype(jnp.float32) - ref_f)) / ref_max
    assert rel_err_auto < 2e-2, f"mismatch vs reference (auto tiles): rel {rel_err_auto}"

    print("KERNEL_OK")
</pallas_src>

<mosaic_0001>
module attributes {stable_mosaic.version = 11 : i64} {
  func.func @_swiglu_mlp_kernel(%arg0: i32, %arg1: i32, %arg2: memref<256x256xbf16, #tpu.memory_space<vmem>>, %arg3: memref<256x256xbf16, #tpu.memory_space<vmem>>, %arg4: memref<256x256xbf16, #tpu.memory_space<vmem>>, %arg5: memref<256x256xbf16, #tpu.memory_space<vmem>>, %arg6: memref<256x256xbf16, #tpu.memory_space<vmem>>, %arg7: memref<256x256xf32, #tpu.memory_space<vmem>>) attributes {dimension_semantics = [#tpu.dimension_semantics<parallel>, #tpu.dimension_semantics<arbitrary>], iteration_bounds = array<i64: 2, 4>, scalar_prefetch = 0 : i64, scratch_operands = 1 : i64, tpu.core_type = #tpu.core_type<tc>, window_params = [{transform_indices = @transform_0, window_bounds = array<i64: 256, 256>}, {transform_indices = @transform_1, window_bounds = array<i64: 256, 256>}, {transform_indices = @transform_2, window_bounds = array<i64: 256, 256>}, {transform_indices = @transform_3, window_bounds = array<i64: 256, 256>}, {transform_indices = @transform_4, window_bounds = array<i64: 256, 256>}]} {
    %c0_i32 = arith.constant 0 : i32
    %0 = arith.cmpi eq, %arg1, %c0_i32 : i32
    %1 = arith.extui %0 : i1 to i32
    %c0_i32_0 = arith.constant 0 : i32
    %2 = arith.cmpi ne, %1, %c0_i32_0 : i32
    scf.if %2 {
      %cst_17 = arith.constant 0.000000e+00 : f32
      %25 = vector.broadcast %cst_17 : f32 to vector<256x256xf32>
      %c0_18 = arith.constant 0 : index
      %c0_19 = arith.constant 0 : index
      %26 = vector.load %arg7[%c0_18, %c0_19] : memref<256x256xf32, #tpu.memory_space<vmem>>, vector<256x256xf32>
      tpu.vector_store %arg7[%c0_18, %c0_19], %25 {strides = array<i32>} : memref<256x256xf32, #tpu.memory_space<vmem>>, vector<256x256xf32>,
    } else {
    }
    %c0 = arith.constant 0 : index
    %c0_1 = arith.constant 0 : index
    %3 = vector.load %arg2[%c0, %c0_1] : memref<256x256xbf16, #tpu.memory_space<vmem>>, vector<256x256xbf16>
    %c0_2 = arith.constant 0 : index
    %c0_3 = arith.constant 0 : index
    %4 = vector.load %arg3[%c0_2, %c0_3] : memref<256x256xbf16, #tpu.memory_space<vmem>>, vector<256x256xbf16>
    %cst = arith.constant dense<0.000000e+00> : vector<256x256xf32>
    %5 = tpu.matmul %3, %4, %cst {dimension_numbers = #tpu.dot_dimension_numbers<[1], [0], [0], [1], [0, 0, 1, 1], [], []>} : vector<256x256xbf16>, vector<256x256xbf16>, vector<256x256xf32> -> vector<256x256xf32>
    %c0_4 = arith.constant 0 : index
    %c0_5 = arith.constant 0 : index
    %6 = vector.load %arg4[%c0_4, %c0_5] : memref<256x256xbf16, #tpu.memory_space<vmem>>, vector<256x256xbf16>
    %cst_6 = arith.constant dense<0.000000e+00> : vector<256x256xf32>
    %7 = tpu.matmul %3, %6, %cst_6 {dimension_numbers = #tpu.dot_dimension_numbers<[1], [0], [0], [1], [0, 0, 1, 1], [], []>} : vector<256x256xbf16>, vector<256x256xbf16>, vector<256x256xf32> -> vector<256x256xf32>
    %cst_7 = arith.constant 0.000000e+00 : f32
    %8 = vector.broadcast %cst_7 : f32 to vector<256x256xf32>
    %9 = arith.subf %8, %5 : vector<256x256xf32>
    %10 = math.exp %9 : vector<256x256xf32>
    %cst_8 = arith.constant 1.000000e+00 : f32
    %11 = vector.broadcast %cst_8 : f32 to vector<256x256xf32>
    %12 = arith.addf %11, %10 : vector<256x256xf32>
    %13 = tpu.reciprocal %12 {approx = true} : vector<256x256xf32> -> vector<256x256xf32>
    %14 = arith.mulf %5, %13 : vector<256x256xf32>
    %15 = arith.mulf %14, %7 : vector<256x256xf32>
    %c0_9 = arith.constant 0 : index
    %c0_10 = arith.constant 0 : index
    %16 = vector.load %arg7[%c0_9, %c0_10] : memref<256x256xf32, #tpu.memory_space<vmem>>, vector<256x256xf32>
    %17 = arith.truncf %15 : vector<256x256xf32> to vector<256x256xbf16>
    %c0_11 = arith.constant 0 : index
    %c0_12 = arith.constant 0 : index
    %18 = vector.load %arg5[%c0_11, %c0_12] : memref<256x256xbf16, #tpu.memory_space<vmem>>, vector<256x256xbf16>
    %cst_13 = arith.constant dense<0.000000e+00> : vector<256x256xf32>
    %19 = tpu.matmul %17, %18, %cst_13 {dimension_numbers = #tpu.dot_dimension_numbers<[1], [0], [0], [1], [0, 0, 1, 1], [], []>} : vector<256x256xbf16>, vector<256x256xbf16>, vector<256x256xf32> -> vector<256x256xf32>
    %20 = arith.addf %16, %19 : vector<256x256xf32>
    %c0_14 = arith.constant 0 : index
    %c0_15 = arith.constant 0 : index
    %21 = vector.load %arg7[%c0_14, %c0_15] : memref<256x256xf32, #tpu.memory_space<vmem>>, vector<256x256xf32>
    tpu.vector_store %arg7[%c0_14, %c0_15], %20 {strides = array<i32>} : memref<256x256xf32, #tpu.memory_space<vmem>>, vector<256x256xf32>,
    %c3_i32 = arith.constant 3 : i32
    %22 = arith.cmpi eq, %arg1, %c3_i32 : i32
    %23 = arith.extui %22 : i1 to i32
    %c0_i32_16 = arith.constant 0 : i32
    %24 = arith.cmpi ne, %23, %c0_i32_16 : i32
    scf.if %24 {
      %c0_17 = arith.constant 0 : index
      %c0_18 = arith.constant 0 : index
      %25 = vector.load %arg7[%c0_17, %c0_18] : memref<256x256xf32, #tpu.memory_space<vmem>>, vector<256x256xf32>
      %26 = arith.truncf %25 : vector<256x256xf32> to vector<256x256xbf16>
      %c0_19 = arith.constant 0 : index
      %c0_20 = arith.constant 0 : index
      %27 = vector.load %arg6[%c0_19, %c0_20] : memref<256x256xbf16, #tpu.memory_space<vmem>>, vector<256x256xbf16>
      tpu.vector_store %arg6[%c0_19, %c0_20], %26 {strides = array<i32>} : memref<256x256xbf16, #tpu.memory_space<vmem>>, vector<256x256xbf16>,
    } else {
    }
    return
  }
  func.func @transform_0(%arg0: i32, %arg1: i32) -> (i32, i32) {
    %c0_i32 = arith.constant 0 : i32
    %c0_i32_0 = arith.constant 0 : i32
    return %arg0, %c0_i32 : i32, i32
  }
  func.func @transform_1(%arg0: i32, %arg1: i32) -> (i32, i32) {
    %c0_i32 = arith.constant 0 : i32
    %c0_i32_0 = arith.constant 0 : i32
    return %c0_i32, %arg1 : i32, i32
  }
  func.func @transform_2(%arg0: i32, %arg1: i32) -> (i32, i32) {
    %c0_i32 = arith.constant 0 : i32
    %c0_i32_0 = arith.constant 0 : i32
    return %c0_i32, %arg1 : i32, i32
  }
  func.func @transform_3(%arg0: i32, %arg1: i32) -> (i32, i32) {
    %c0_i32 = arith.constant 0 : i32
    %c0_i32_0 = arith.constant 0 : i32
    return %arg1, %c0_i32 : i32, i32
  }
  func.func @transform_4(%arg0: i32, %arg1: i32) -> (i32, i32) {
    %c0_i32 = arith.constant 0 : i32
    %c0_i32_0 = arith.constant 0 : i32
    return %arg0, %c0_i32 : i32, i32
  }
}

</mosaic_0001>

<llo_original>
// kernel: tpu_custom_call.1
$region0: #{tpu_custom_call.1}
  #allocation0 [shape = 'u32[]', space=smem, size = 0x4, offset = 0x4, fixed_abs, tag = 'smem constant byte address 0x4 - core index']
  #allocation1 [shape = 'u32[144,128]{1,0:T(1,128)}', space=vmem, size = 0x12000, scoped, tag = 'internal scratch']
  #allocation2 [shape = 'f32[256,256]{1,0:T(8,128)}', space=vmem, size = 0x40000, scoped, tag = 'scratch operand']
  %s0 = inlined_call_operand.hbm [shape: bf16[500,256], index: 0, kind: input, shape index: {}]
  %s1 = inlined_call_operand.hbm [shape: bf16[256,1024], index: 1, kind: input, shape index: {}]
  %s2 = inlined_call_operand.hbm [shape: bf16[256,1024], index: 2, kind: input, shape index: {}]
  %s3 = inlined_call_operand.hbm [shape: bf16[1024,256], index: 3, kind: input, shape index: {}]
  %s4 = inlined_call_operand.hbm [shape: bf16[500,256], index: 4, kind: output, shape index: {}]
  %s5 = sld [smem:[#allocation0]]
  $region73: #{tpu_custom_call.1} parent=0
    _
  %s7 = ssub.s32 1, %s5
  %s8 = scalar_select 0, %s7, %s5
  $region1: #{tpu_custom_call.1} parent=0
    #allocation3 [shape = 'u8[262144]{0}', space=vmem, size = 0x40000, scoped, tag = 'input window, operand 0']
    #allocation4 [shape = 's32[2]{0}', space=sflag, size = 0x8, scoped, tag = 'scoped memory for tpu_custom_call.1']
    #allocation5 [shape = 's32[2]{0}', space=sflag, size = 0x8, scoped, tag = 'scoped memory for tpu_custom_call.1']
    #allocation6 [shape = 'u8[262144]{0}', space=vmem, size = 0x40000, scoped, tag = 'input window, operand 1']
    #allocation7 [shape = 's32[2]{0}', space=sflag, size = 0x8, scoped, tag = 'scoped memory for tpu_custom_call.1']
    #allocation8 [shape = 'u8[262144]{0}', space=vmem, size = 0x40000, scoped, tag = 'input window, operand 2']
    #allocation9 [shape = 'u8[262144]{0}', space=vmem, size = 0x40000, scoped, tag = 'input window, operand 3']
    #allocation10 [shape = 's32[2]{0}', space=sflag, size = 0x8, scoped, tag = 'scoped memory for tpu_custom_call.1']
    #allocation11 [shape = 'u8[262144]{0}', space=vmem, size = 0x40000, scoped, tag = 'output window, operand 0']
    %9 = vsyncpa [#allocation4], 0
    %s10 = scalar_lea.sflag [#allocation4], 1
    %11 = vsyncpa %s10, 0
    %12 = vsyncpa [#allocation7], 0
    %s13 = scalar_lea.sflag [#allocation7], 1
    %14 = vsyncpa %s13, 0
    %15 = vsyncpa [#allocation10], 0
    %s16 = scalar_lea.sflag [#allocation10], 1
    %17 = vsyncpa %s16, 0
    %18 = vsyncpa [#allocation5], 0
    %s19 = scalar_lea.sflag [#allocation5], 1
    %20 = vsyncpa %s19, 0
    loop: start=0, step=1, limit=10
    $region2: #{tpu_custom_call.1} parent=1 // loop_pre_header
      _
    $region3: #{tpu_custom_call.1} parent=1 // loop_header
      %s22 = sphi 0, %s26
      %p23 = scmp.ge.s32.totalorder %s22, 10
      %s29 = sphi 0, %s41
      %s30 = sphi 0, %s37
      %s31 = sphi 0, %s29
      %s32 = sphi 0, %s30
      %s33 = sphi 0, %s31
      %s34 = sphi 0, %s32
      %s44 = sphi 0, %s46
      %s47 = sphi 0, %s44
      %s48 = sphi 0, %s47
      %s64 = sphi 0, %s48
      %s70 = sphi 0, %s72
      %s73 = sphi 0, %s70
      %s74 = sphi 0, %s73
      %s90 = sphi 0, %s74
      %s96 = sphi 0, %s98
      %s99 = sphi 0, %s96
      %s100 = sphi 0, %s99
      %s116 = sphi 0, %s100
      %s122 = sphi 0, %s124
      %s125 = sphi 0, %s122
      %s126 = sphi 0, %s125
      %s142 = sphi 0, %s126
      %s148 = sphi 0, %s150
      %s151 = sphi 0, %s148
      %s152 = sphi 0, %s151
      %s168 = sphi 0, %s152
    $region4: #{tpu_custom_call.1} parent=1 // loop_header_branch
      %25 = sbr.rel (%p23) target = $region8
    $region5: #{tpu_custom_call.1} parent=1 // loop_body
      %s27 = ssub.s32 %s22, 1
      %s28 = ssub.s32 %s22, 2
      %s35 = sadd.s32 1, %s30
      %p36 = scmp.ge.s32.totalorder %s35, 4
      %s37 = scalar_select %p36, 0, %s35
      %s38 = sadd.s32 1, %s29
      %s39 = scalar_select %p36, %s38, %s29
      %p40 = scmp.ge.s32.totalorder %s39, 2
      %s41 = scalar_select %p40, 0, %s39
      %s42 = ssub.s32 %s29, %s41
      %p43 = scmp.eq.s32.totalorder %s42, 0
      %s45 = sadd.s32 %s44, 1
      %s46 = scalar_select %p43, %s44, %s45
      %p49 = pneg %p43
      %p50 = scmp.eq.s32.totalorder %s22, 7
      %p51 = por %p49, %p50
      %p52 = scmp.ne.s32.totalorder %s44, %s47
      %p53 = scmp.eq.s32.totalorder %s22, 0
      %p54 = por %p52, %p53
      %p55 = scmp.ne.s32.totalorder %s44, %s47
      %p56 = scmp.eq.s32.totalorder %s27, 7
      %p57 = por %p55, %p56
      %p58 = scmp.ne.s32.totalorder %s47, %s48
      %p59 = scmp.eq.s32.totalorder %s27, 0
      %p60 = por %p58, %p59
      %p61 = scmp.ne.s32.totalorder %s47, %s48
      %p62 = scmp.eq.s32.totalorder %s28, 7
      %p63 = por %p61, %p62
      %p65 = scmp.ne.s32.totalorder %s48, %s64
      %p66 = scmp.eq.s32.totalorder %s28, 0
      %p67 = por %p65, %p66
      %s68 = ssub.s32 %s30, %s37
      %p69 = scmp.eq.s32.totalorder %s68, 0
      %s71 = sadd.s32 %s70, 1
      %s72 = scalar_select %p69, %s70, %s71
      %p75 = pneg %p69
      %p76 = scmp.eq.s32.totalorder %s22, 7
      %p77 = por %p75, %p76
      %p78 = scmp.ne.s32.totalorder %s70, %s73
      %p79 = scmp.eq.s32.totalorder %s22, 0
      %p80 = por %p78, %p79
      %p81 = scmp.ne.s32.totalorder %s70, %s73
      %p82 = scmp.eq.s32.totalorder %s27, 7
      %p83 = por %p81, %p82
      %p84 = scmp.ne.s32.totalorder %s73, %s74
      %p85 = scmp.eq.s32.totalorder %s27, 0
      %p86 = por %p84, %p85
      %p87 = scmp.ne.s32.totalorder %s73, %s74
      %p88 = scmp.eq.s32.totalorder %s28, 7
      %p89 = por %p87, %p88
      %p91 = scmp.ne.s32.totalorder %s74, %s90
      %p92 = scmp.eq.s32.totalorder %s28, 0
      %p93 = por %p91, %p92
      %s94 = ssub.s32 %s30, %s37
      %p95 = scmp.eq.s32.totalorder %s94, 0
      %s97 = sadd.s32 %s96, 1
      %s98 = scalar_select %p95, %s96, %s97
      %p101 = pneg %p95
      %p102 = scmp.eq.s32.totalorder %s22, 7
      %p103 = por %p101, %p102
      %p104 = scmp.ne.s32.totalorder %s96, %s99
      %p105 = scmp.eq.s32.totalorder %s22, 0
      %p106 = por %p104, %p105
      %p107 = scmp.ne.s32.totalorder %s96, %s99
      %p108 = scmp.eq.s32.totalorder %s27, 7
      %p109 = por %p107, %p108
      %p110 = scmp.ne.s32.totalorder %s99, %s100
      %p111 = scmp.eq.s32.totalorder %s27, 0
      %p112 = por %p110, %p111
      %p113 = scmp.ne.s32.totalorder %s99, %s100
      %p114 = scmp.eq.s32.totalorder %s28, 7
      %p115 = por %p113, %p114
      %p117 = scmp.ne.s32.totalorder %s100, %s116
      %p118 = scmp.eq.s32.totalorder %s28, 0
      %p119 = por %p117, %p118
      %s120 = ssub.s32 %s30, %s37
      %p121 = scmp.eq.s32.totalorder %s120, 0
      %s123 = sadd.s32 %s122, 1
      %s124 = scalar_select %p121, %s122, %s123
      %p127 = pneg %p121
      %p128 = scmp.eq.s32.totalorder %s22, 7
      %p129 = por %p127, %p128
      %p130 = scmp.ne.s32.totalorder %s122, %s125
      %p131 = scmp.eq.s32.totalorder %s22, 0
      %p132 = por %p130, %p131
      %p133 = scmp.ne.s32.totalorder %s122, %s125
      %p134 = scmp.eq.s32.totalorder %s27, 7
      %p135 = por %p133, %p134
      %p136 = scmp.ne.s32.totalorder %s125, %s126
      %p137 = scmp.eq.s32.totalorder %s27, 0
      %p138 = por %p136, %p137
      %p139 = scmp.ne.s32.totalorder %s125, %s126
      %p140 = scmp.eq.s32.totalorder %s28, 7
      %p141 = por %p139, %p140
      %p143 = scmp.ne.s32.totalorder %s126, %s142
      %p144 = scmp.eq.s32.totalorder %s28, 0
      %p145 = por %p143, %p144
      %s146 = ssub.s32 %s29, %s41
      %p147 = scmp.eq.s32.totalorder %s146, 0
      %s149 = sadd.s32 %s148, 1
      %s150 = scalar_select %p147, %s148, %s149
      %p153 = pneg %p147
      %p154 = scmp.eq.s32.totalorder %s22, 7
      %p155 = por %p153, %p154
      %p156 = scmp.ne.s32.totalorder %s148, %s151
      %p157 = scmp.eq.s32.totalorder %s22, 0
      %p158 = por %p156, %p157
      %p159 = scmp.ne.s32.totalorder %s148, %s151
      %p160 = scmp.eq.s32.totalorder %s27, 7
      %p161 = por %p159, %p160
      %p162 = scmp.ne.s32.totalorder %s151, %s152
      %p163 = scmp.eq.s32.totalorder %s27, 0
      %p164 = por %p162, %p163
      %p165 = scmp.ne.s32.totalorder %s151, %s152
      %p166 = scmp.eq.s32.totalorder %s28, 7
      %p167 = por %p165, %p166
      %p169 = scmp.ne.s32.totalorder %s152, %s168
      %p170 = scmp.eq.s32.totalorder %s28, 0
      %p171 = por %p169, %p170
      %p172 = scmp.le.s32.totalorder 1, %s22
      %p173 = scmp.lt.s32.totalorder %s22, 9
      %p174 = pnand %p172, %p173
      %p175 = pneg %p174
      // Predicated region
      $region9: #{tpu_custom_call.1} parent=5 // pred_check
        _
      $region10: #{tpu_custom_call.1} parent=5 // pred_check_branch
        %177 = sbr.rel (%p174) target = $region12
      $region11: #{tpu_custom_call.1} parent=5 // pred_region
        %s178 = ssub.s32 %s22, 1
      $region12: #{tpu_custom_call.1} parent=5 // pred_fallthru
        _
      %p179 = scmp.lt.s32.totalorder %s22, 8
      // Predicated region
      $region13: #{tpu_custom_call.1} parent=5 // pred_check
        %p180 = pneg %p179
      $region14: #{tpu_custom_call.1} parent=5 // pred_check_branch
        %182 = sbr.rel (%p180) target = $region16
      $region15: #{tpu_custom_call.1} parent=5 // pred_region
        // Predicated region
        $region17: #{tpu_custom_call.1} parent=15 // pred_check
          %p183 = pneg %p54
        $region18: #{tpu_custom_call.1} parent=15 // pred_check_branch
          %185 = sbr.rel (%p183) target = $region20
        $region19: #{tpu_custom_call.1} parent=15 // pred_region
          %s186 = sand.u32 %s44, 1
          %s187 = scalar_lea.sflag [#allocation4], %s186
          %s188 = sand.u32 %s44, 1
          %s189 = smul.addr %s188, 256
          %s190 = scalar_lea.vmem [#allocation3], %s189
          %s191 = smul.u32 32, %s29
          %s192 = ssub.s32 63, %s191
          %p193 = scmp.lt.s32.totalorder %s192, 32
          %s194 = scalar_select %p193, %s192, 32
          %s195 = smul.u32 64, %s194
          %s196 = smul.u32 %s195, 2
          %s198 = ssub.s32 4096, %s196
          %199 = vsyncadd %s187, %s198
          %p200 = scmp.ne.s32.totalorder 0, %s196
          %s201 = smul.addr %s191, 2
          %s202 = smul.addr %s201, 64
          %s203 = scalar_lea.hbm %s0, %s202
          %s204 = smul.u32 8, %s194
          %s205 = sshll.u32 %s190, 4
          %s206 = int_to_ptr.vmem [resolvable:$true] %s205
          %s207 = sshll.u32 %s204, 4
          %211 = dma.hbm_to_vmem [thread:$0]  (%p200), %s203, %s207, %s206, %s187, 128, 128, 8
        $region20: #{tpu_custom_call.1} parent=15 // pred_fallthru
          _
        // Predicated region
        $region21: #{tpu_custom_call.1} parent=15 // pred_check
          %p212 = pneg %p80
        $region22: #{tpu_custom_call.1} parent=15 // pred_check_branch
          %214 = sbr.rel (%p212) target = $region24
        $region23: #{tpu_custom_call.1} parent=15 // pred_region
          %s215 = sand.u32 %s22, 1
          %s216 = scalar_lea.sflag [#allocation7], %s215
          %s217 = sand.u32 %s70, 1
          %s218 = smul.addr %s217, 256
          %s219 = scalar_lea.vmem [#allocation6], %s218
          %s220 = smul.u32 2, %s30
          %s222 = ssub.s32 4096, 4096
          %223 = vsyncadd %s216, %s222
          %s224 = smul.addr %s220, 64
          %s225 = scalar_lea.hbm %s1, %s224
          %s226 = sshll.u32 %s219, 4
          %s227 = int_to_ptr.vmem [resolvable:$true] %s226
          %232 = dma.hbm_to_vmem [thread:$0]  %s225, 4096, %s227, %s216, 512, 128, 8
        $region24: #{tpu_custom_call.1} parent=15 // pred_fallthru
          _
        // Predicated region
        $region25: #{tpu_custom_call.1} parent=15 // pred_check
          %p233 = pneg %p106
        $region26: #{tpu_custom_call.1} parent=15 // pred_check_branch
          %235 = sbr.rel (%p233) target = $region28
        $region27: #{tpu_custom_call.1} parent=15 // pred_region
          %s236 = sand.u32 %s22, 1
          %s237 = scalar_lea.sflag [#allocation7], %s236
          %s238 = sand.u32 %s96, 1
          %s239 = smul.addr %s238, 256
          %s240 = scalar_lea.vmem [#allocation8], %s239
          %s241 = smul.u32 2, %s30
          %s243 = ssub.s32 4096, 4096
          %244 = vsyncadd %s237, %s243
          %s245 = smul.addr %s241, 64
          %s246 = scalar_lea.hbm %s2, %s245
          %s247 = sshll.u32 %s240, 4
          %s248 = int_to_ptr.vmem [resolvable:$true] %s247
          %253 = dma.hbm_to_vmem [thread:$0]  %s246, 4096, %s248, %s237, 512, 128, 8
        $region28: #{tpu_custom_call.1} parent=15 // pred_fallthru
          _
        // Predicated region
        $region29: #{tpu_custom_call.1} parent=15 // pred_check
          %p254 = pneg %p132
        $region30: #{tpu_custom_call.1} parent=15 // pred_check_branch
          %256 = sbr.rel (%p254) target = $region32
        $region31: #{tpu_custom_call.1} parent=15 // pred_region
          %s257 = sand.u32 %s122, 1
          %s258 = scalar_lea.sflag [#allocation10], %s257
          %s259 = sand.u32 %s122, 1
          %s260 = smul.addr %s259, 256
          %s261 = scalar_lea.vmem [#allocation9], %s260
          %s262 = smul.u32 32, %s30
          %s264 = ssub.s32 4096, 4096
          %265 = vsyncadd %s258, %s264
          %s266 = smul.addr %s262, 2
          %s267 = smul.addr %s266, 64
          %s268 = scalar_lea.hbm %s3, %s267
          %s269 = sshll.u32 %s261, 4
          %s270 = int_to_ptr.vmem [resolvable:$true] %s269
          %275 = dma.hbm_to_vmem [thread:$0]  %s268, 4096, %s270, %s258, 128, 128, 8
        $region32: #{tpu_custom_call.1} parent=15 // pred_fallthru
          _
      $region16: #{tpu_custom_call.1} parent=5 // pred_fallthru
        _
      %p276 = scmp.le.s32.totalorder 1, %s22
      %p277 = scmp.lt.s32.totalorder %s22, 9
      %p278 = pnand %p276, %p277
      %p279 = pneg %p278
      // Predicated region
      $region33: #{tpu_custom_call.1} parent=5 // pred_check
        _
      $region34: #{tpu_custom_call.1} parent=5 // pred_check_branch
        %281 = sbr.rel (%p278) target = $region36
      $region35: #{tpu_custom_call.1} parent=5 // pred_region
        %s282 = ssub.s32 %s22, 1
        %s283 = sand.u32 %s47, 1
        %s284 = scalar_lea.sflag [#allocation4], %s283
        %s285 = sand.u32 %s47, 1
        %s286 = smul.addr %s285, 256
        %s287 = scalar_lea.vmem [#allocation3], %s286
        // Predicated region
        $region37: #{tpu_custom_call.1} parent=35 // pred_check
          %p288 = pneg %p60
        $region38: #{tpu_custom_call.1} parent=35 // pred_check_branch
          %290 = sbr.rel (%p288) target = $region40
        $region39: #{tpu_custom_call.1} parent=35 // pred_region
          %291 = dma.done %s284, 4096
        $region40: #{tpu_custom_call.1} parent=35 // pred_fallthru
          _
        %s292 = sand.u32 %s27, 1
        %s293 = scalar_lea.sflag [#allocation7], %s292
        %s294 = sand.u32 %s73, 1
        %s295 = smul.addr %s294, 256
        %s296 = scalar_lea.vmem [#allocation6], %s295
        // Predicated region
        $region41: #{tpu_custom_call.1} parent=35 // pred_check
          %p297 = pneg %p86
        $region42: #{tpu_custom_call.1} parent=35 // pred_check_branch
          %299 = sbr.rel (%p297) target = $region44
        $region43: #{tpu_custom_call.1} parent=35 // pred_region
          %300 = dma.done %s293, 4096
        $region44: #{tpu_custom_call.1} parent=35 // pred_fallthru
          _
        %s301 = sand.u32 %s27, 1
        %s302 = scalar_lea.sflag [#allocation7], %s301
        %s303 = sand.u32 %s99, 1
        %s304 = smul.addr %s303, 256
        %s305 = scalar_lea.vmem [#allocation8], %s304
        // Predicated region
        $region45: #{tpu_custom_call.1} parent=35 // pred_check
          %p306 = pneg %p112
        $region46: #{tpu_custom_call.1} parent=35 // pred_check_branch
          %308 = sbr.rel (%p306) target = $region48
        $region47: #{tpu_custom_call.1} parent=35 // pred_region
          %309 = dma.done %s302, 4096
        $region48: #{tpu_custom_call.1} parent=35 // pred_fallthru
          _
        %s310 = sand.u32 %s125, 1
        %s311 = scalar_lea.sflag [#allocation10], %s310
        %s312 = sand.u32 %s125, 1
        %s313 = smul.addr %s312, 256
        %s314 = scalar_lea.vmem [#allocation9], %s313
        // Predicated region
        $region49: #{tpu_custom_call.1} parent=35 // pred_check
          %p315 = pneg %p138
        $region50: #{tpu_custom_call.1} parent=35 // pred_check_branch
          %317 = sbr.rel (%p315) target = $region52
        $region51: #{tpu_custom_call.1} parent=35 // pred_region
          %318 = dma.done %s311, 4096
        $region52: #{tpu_custom_call.1} parent=35 // pred_fallthru
          _
        %s319 = sand.u32 %s47, 1
        %s320 = scalar_lea.sflag [#allocation4], %s319
        %s321 = sand.u32 %s47, 1
        %s322 = smul.addr %s321, 256
        %s323 = scalar_lea.vmem [#allocation3], %s322
        %p324 = pneg %p60
        %p325 = pneg %p57
        %s326 = sand.u32 %s27, 1
        %s327 = scalar_lea.sflag [#allocation7], %s326
        %s328 = sand.u32 %s73, 1
        %s329 = smul.addr %s328, 256
        %s330 = scalar_lea.vmem [#allocation6], %s329
        %p331 = pneg %p86
        %p332 = pneg %p83
        %s333 = sand.u32 %s27, 1
        %s334 = scalar_lea.sflag [#allocation7], %s333
        %s335 = sand.u32 %s99, 1
        %s336 = smul.addr %s335, 256
        %s337 = scalar_lea.vmem [#allocation8], %s336
        %p338 = pneg %p112
        %p339 = pneg %p109
        %s340 = sand.u32 %s125, 1
        %s341 = scalar_lea.sflag [#allocation10], %s340
        %s342 = sand.u32 %s125, 1
        %s343 = smul.addr %s342, 256
        %s344 = scalar_lea.vmem [#allocation9], %s343
        %p345 = pneg %p138
        %p346 = pneg %p135
        %p347 = pneg %p164
        %p348 = pneg %p161
        %s349 = sand.u32 %s151, 1
        %s350 = scalar_lea.sflag [#allocation5], %s349
        %s351 = sand.u32 %s151, 1
        %s352 = smul.addr %s351, 256
        %s353 = scalar_lea.vmem [#allocation11], %s352
        %s354 = smul.u32 32, %s31
        %s355 = ssub.s32 63, %s354
        %p356 = scmp.lt.s32.totalorder %s355, 32
        %s357 = scalar_select %p356, %s355, 32
        %s358 = smul.u32 64, %s357
        %s359 = smul.u32 %s358, 2
        %s360 = smul.u32 2, %s32
        %s361 = smul.u32 2, %s32
        %s362 = smul.u32 32, %s32
        %s363 = smul.u32 32, %s31
        %s364 = ssub.s32 63, %s363
        %p365 = scmp.lt.s32.totalorder %s364, 32
        %s366 = scalar_select %p365, %s364, 32
        %s367 = smul.u32 64, %s366
        %s368 = smul.u32 %s367, 2
        %p369 = scmp.eq.s32.totalorder %s32, 0
        // Predicated region
        $region53: #{tpu_custom_call.1} parent=35 // pred_check
          %p370 = pneg %p369
        $region54: #{tpu_custom_call.1} parent=35 // pred_check_branch
          %372 = sbr.rel (%p370) target = $region56
        $region55: #{tpu_custom_call.1} parent=35 // pred_region
          %373 = vst [vmem:[#allocation2] sm:$0xff] 0.0
          %374 = vst [vmem:[#allocation2 + $0x8] sm:$0xff] 0.0
          %375 = vst [vmem:[#allocation2 + $0x10] sm:$0xff] 0.0
          %376 = vst [vmem:[#allocation2 + $0x18] sm:$0xff] 0.0
          %377 = vst [vmem:[#allocation2 + $0x20] sm:$0xff] 0.0
          %378 = vst [vmem:[#allocation2 + $0x28] sm:$0xff] 0.0
          %379 = vst [vmem:[#allocation2 + $0x30] sm:$0xff] 0.0
          %380 = vst [vmem:[#allocation2 + $0x38] sm:$0xff] 0.0
          %381 = vst [vmem:[#allocation2 + $0x40] sm:$0xff] 0.0
          %382 = vst [vmem:[#allocation2 + $0x48] sm:$0xff] 0.0
          %383 = vst [vmem:[#allocation2 + $0x50] sm:$0xff] 0.0
          %384 = vst [vmem:[#allocation2 + $0x58] sm:$0xff] 0.0
          %385 = vst [vmem:[#allocation2 + $0x60] sm:$0xff] 0.0
          %386 = vst [vmem:[#allocation2 + $0x68] sm:$0xff] 0.0
          %387 = vst [vmem:[#allocation2 + $0x70] sm:$0xff] 0.0
          %388 = vst [vmem:[#allocation2 + $0x78] sm:$0xff] 0.0
          %389 = vst [vmem:[#allocation2 + $0x80] sm:$0xff] 0.0
          %390 = vst [vmem:[#allocation2 + $0x88] sm:$0xff] 0.0
          %391 = vst [vmem:[#allocation2 + $0x90] sm:$0xff] 0.0
          %392 = vst [vmem:[#allocation2 + $0x98] sm:$0xff] 0.0
          %393 = vst [vmem:[#allocation2 + $0xa0] sm:$0xff] 0.0
          %394 = vst [vmem:[#allocation2 + $0xa8] sm:$0xff] 0.0
          %395 = vst [vmem:[#allocation2 + $0xb0] sm:$0xff] 0.0
          %396 = vst [vmem:[#allocation2 + $0xb8] sm:$0xff] 0.0
          %397 = vst [vmem:[#allocation2 + $0xc0] sm:$0xff] 0.0
          %398 = vst [vmem:[#allocation2 + $0xc8] sm:$0xff] 0.0
          %399 = vst [vmem:[#allocation2 + $0xd0] sm:$0xff] 0.0
          %400 = vst [vmem:[#allocation2 + $0xd8] sm:$0xff] 0.0
          %401 = vst [vmem:[#allocation2 + $0xe0] sm:$0xff] 0.0
          %402 = vst [vmem:[#allocation2 + $0xe8] sm:$0xff] 0.0
          %403 = vst [vmem:[#allocation2 + $0xf0] sm:$0xff] 0.0
          %404 = vst [vmem:[#allocation2 + $0xf8] sm:$0xff] 0.0
          %405 = vst [vmem:[#allocation2 + $0x100] sm:$0xff] 0.0
          %406 = vst [vmem:[#allocation2 + $0x108] sm:$0xff] 0.0
          %407 = vst [vmem:[#allocation2 + $0x110] sm:$0xff] 0.0
          %408 = vst [vmem:[#allocation2 + $0x118] sm:$0xff] 0.0
          %409 = vst [vmem:[#allocation2 + $0x120] sm:$0xff] 0.0
          %410 = vst [vmem:[#allocation2 + $0x128] sm:$0xff] 0.0
          %411 = vst [vmem:[#allocation2 + $0x130] sm:$0xff] 0.0
          %412 = vst [vmem:[#allocation2 + $0x138] sm:$0xff] 0.0
          %413 = vst [vmem:[#allocation2 + $0x140] sm:$0xff] 0.0
          %414 = vst [vmem:[#allocation2 + $0x148] sm:$0xff] 0.0
          %415 = vst [vmem:[#allocation2 + $0x150] sm:$0xff] 0.0
          %416 = vst [vmem:[#allocation2 + $0x158] sm:$0xff] 0.0
          %417 = vst [vmem:[#allocation2 + $0x160] sm:$0xff] 0.0
          %418 = vst [vmem:[#allocation2 + $0x168] sm:$0xff] 0.0
          %419 = vst [vmem:[#allocation2 + $0x170] sm:$0xff] 0.0
          %420 = vst [vmem:[#allocation2 + $0x178] sm:$0xff] 0.0
          %421 = vst [vmem:[#allocation2 + $0x180] sm:$0xff] 0.0
          %422 = vst [vmem:[#allocation2 + $0x188] sm:$0xff] 0.0
          %423 = vst [vmem:[#allocation2 + $0x190] sm:$0xff] 0.0
          %424 = vst [vmem:[#allocation2 + $0x198] sm:$0xff] 0.0
          %425 = vst [vmem:[#allocation2 + $0x1a0] sm:$0xff] 0.0
          %426 = vst [vmem:[#allocation2 + $0x1a8] sm:$0xff] 0.0
          %427 = vst [vmem:[#allocation2 + $0x1b0] sm:$0xff] 0.0
          %428 = vst [vmem:[#allocation2 + $0x1b8] sm:$0xff] 0.0
          %429 = vst [vmem:[#allocation2 + $0x1c0] sm:$0xff] 0.0
          %430 = vst [vmem:[#allocation2 + $0x1c8] sm:$0xff] 0.0
          %431 = vst [vmem:[#allocation2 + $0x1d0] sm:$0xff] 0.0
          %432 = vst [vmem:[#allocation2 + $0x1d8] sm:$0xff] 0.0
          %433 = vst [vmem:[#allocation2 + $0x1e0] sm:$0xff] 0.0
          %434 = vst [vmem:[#allocation2 + $0x1e8] sm:$0xff] 0.0
          %435 = vst [vmem:[#allocation2 + $0x1f0] sm:$0xff] 0.0
          %436 = vst [vmem:[#allocation2 + $0x1f8] sm:$0xff] 0.0
        $region56: #{tpu_custom_call.1} parent=35 // pred_fallthru
          _
        %v437 = vld [vmem:[%s287] sm:$0xff]
        %v438 = vld [vmem:[%s287 + $0x8] sm:$0xff]
        %v439 = vld [vmem:[%s287 + $0x10] sm:$0xff]
        %v440 = vld [vmem:[%s287 + $0x18] sm:$0xff]
        %v441 = vld [vmem:[%s287 + $0x20] sm:$0xff]
        %v442 = vld [vmem:[%s287 + $0x28] sm:$0xff]
        %v443 = vld [vmem:[%s287 + $0x30] sm:$0xff]
        %v444 = vld [vmem:[%s287 + $0x38] sm:$0xff]
        %v445 = vld [vmem:[%s287 + $0x40] sm:$0xff]
        %v446 = vld [vmem:[%s287 + $0x48] sm:$0xff]
        %v447 = vld [vmem:[%s287 + $0x50] sm:$0xff]
        %v448 = vld [vmem:[%s287 + $0x58] sm:$0xff]
        %v449 = vld [vmem:[%s287 + $0x60] sm:$0xff]
        %v450 = vld [vmem:[%s287 + $0x68] sm:$0xff]
        %v451 = vld [vmem:[%s287 + $0x70] sm:$0xff]
        %v452 = vld [vmem:[%s287 + $0x78] sm:$0xff]
        %v453 = vld [vmem:[%s287 + $0x80] sm:$0xff]
        %v454 = vld [vmem:[%s287 + $0x88] sm:$0xff]
        %v455 = vld [vmem:[%s287 + $0x90] sm:$0xff]
        %v456 = vld [vmem:[%s287 + $0x98] sm:$0xff]
        %v457 = vld [vmem:[%s287 + $0xa0] sm:$0xff]
        %v458 = vld [vmem:[%s287 + $0xa8] sm:$0xff]
        %v459 = vld [vmem:[%s287 + $0xb0] sm:$0xff]
        %v460 = vld [vmem:[%s287 + $0xb8] sm:$0xff]
        %v461 = vld [vmem:[%s287 + $0xc0] sm:$0xff]
        %v462 = vld [vmem:[%s287 + $0xc8] sm:$0xff]
        %v463 = vld [vmem:[%s287 + $0xd0] sm:$0xff]
        %v464 = vld [vmem:[%s287 + $0xd8] sm:$0xff]
        %v465 = vld [vmem:[%s287 + $0xe0] sm:$0xff]
        %v466 = vld [vmem:[%s287 + $0xe8] sm:$0xff]
        %v467 = vld [vmem:[%s287 + $0xf0] sm:$0xff]
        %v468 = vld [vmem:[%s287 + $0xf8] sm:$0xff]
        %v469 = vld [vmem:[%s296] sm:$0xff]
        %v470 = vld [vmem:[%s296 + $0x8] sm:$0xff]
        %v471 = vld [vmem:[%s296 + $0x10] sm:$0xff]
        %v472 = vld [vmem:[%s296 + $0x18] sm:$0xff]
        %v473 = vld [vmem:[%s296 + $0x20] sm:$0xff]
        %v474 = vld [vmem:[%s296 + $0x28] sm:$0xff]
        %v475 = vld [vmem:[%s296 + $0x30] sm:$0xff]
        %v476 = vld [vmem:[%s296 + $0x38] sm:$0xff]
        %v477 = vld [vmem:[%s296 + $0x40] sm:$0xff]
        %v478 = vld [vmem:[%s296 + $0x48] sm:$0xff]
        %v479 = vld [vmem:[%s296 + $0x50] sm:$0xff]
        %v480 = vld [vmem:[%s296 + $0x58] sm:$0xff]
        %v481 = vld [vmem:[%s296 + $0x60] sm:$0xff]
        %v482 = vld [vmem:[%s296 + $0x68] sm:$0xff]
        %v483 = vld [vmem:[%s296 + $0x70] sm:$0xff]
        %v484 = vld [vmem:[%s296 + $0x78] sm:$0xff]
        %v485 = vld [vmem:[%s296 + $0x80] sm:$0xff]
        %v486 = vld [vmem:[%s296 + $0x88] sm:$0xff]
        %v487 = vld [vmem:[%s296 + $0x90] sm:$0xff]
        %v488 = vld [vmem:[%s296 + $0x98] sm:$0xff]
        %v489 = vld [vmem:[%s296 + $0xa0] sm:$0xff]
        %v490 = vld [vmem:[%s296 + $0xa8] sm:$0xff]
        %v491 = vld [vmem:[%s296 + $0xb0] sm:$0xff]
        %v492 = vld [vmem:[%s296 + $0xb8] sm:$0xff]
        %v493 = vld [vmem:[%s296 + $0xc0] sm:$0xff]
        %v494 = vld [vmem:[%s296 + $0xc8] sm:$0xff]
        %v495 = vld [vmem:[%s296 + $0xd0] sm:$0xff]
        %v496 = vld [vmem:[%s296 + $0xd8] sm:$0xff]
        %v497 = vld [vmem:[%s296 + $0xe0] sm:$0xff]
        %v498 = vld [vmem:[%s296 + $0xe8] sm:$0xff]
        %v499 = vld [vmem:[%s296 + $0xf0] sm:$0xff]
        %v500 = vld [vmem:[%s296 + $0xf8] sm:$0xff]
        %v533 = vunpack.c.l.b16 %v437
        %v534 = vunpack.c.h.b16 %v437
        %v535 = vunpack.c.l.b16 %v438
        %v536 = vunpack.c.h.b16 %v438
        %v537 = vunpack.c.l.b16 %v439
        %v538 = vunpack.c.h.b16 %v439
        %v539 = vunpack.c.l.b16 %v440
        %v540 = vunpack.c.h.b16 %v440
        %v541 = vunpack.c.l.b16 %v441
        %v542 = vunpack.c.h.b16 %v441
        %v543 = vunpack.c.l.b16 %v442
        %v544 = vunpack.c.h.b16 %v442
        %v545 = vunpack.c.l.b16 %v443
        %v546 = vunpack.c.h.b16 %v443
        %v547 = vunpack.c.l.b16 %v444
        %v548 = vunpack.c.h.b16 %v444
        %v549 = vunpack.c.l.b16 %v445
        %v550 = vunpack.c.h.b16 %v445
        %v551 = vunpack.c.l.b16 %v446
        %v552 = vunpack.c.h.b16 %v446
        %v553 = vunpack.c.l.b16 %v447
        %v554 = vunpack.c.h.b16 %v447
        %v555 = vunpack.c.l.b16 %v448
        %v556 = vunpack.c.h.b16 %v448
        %v557 = vunpack.c.l.b16 %v449
        %v558 = vunpack.c.h.b16 %v449
        %v559 = vunpack.c.l.b16 %v450
        %v560 = vunpack.c.h.b16 %v450
        %v561 = vunpack.c.l.b16 %v451
        %v562 = vunpack.c.h.b16 %v451
        %v563 = vunpack.c.l.b16 %v452
        %v564 = vunpack.c.h.b16 %v452
        %v565 = vunpack.c.l.b16 %v453
        %v566 = vunpack.c.h.b16 %v453
        %v567 = vunpack.c.l.b16 %v454
        %v568 = vunpack.c.h.b16 %v454
        %v569 = vunpack.c.l.b16 %v455
        %v570 = vunpack.c.h.b16 %v455
        %v571 = vunpack.c.l.b16 %v456
        %v572 = vunpack.c.h.b16 %v456
        %v573 = vunpack.c.l.b16 %v457
        %v574 = vunpack.c.h.b16 %v457
        %v575 = vunpack.c.l.b16 %v458
        %v576 = vunpack.c.h.b16 %v458
        %v577 = vunpack.c.l.b16 %v459
        %v578 = vunpack.c.h.b16 %v459
        %v579 = vunpack.c.l.b16 %v460
        %v580 = vunpack.c.h.b16 %v460
        %v581 = vunpack.c.l.b16 %v461
        %v582 = vunpack.c.h.b16 %v461
        %v583 = vunpack.c.l.b16 %v462
        %v584 = vunpack.c.h.b16 %v462
        %v585 = vunpack.c.l.b16 %v463
        %v586 = vunpack.c.h.b16 %v463
        %v587 = vunpack.c.l.b16 %v464
        %v588 = vunpack.c.h.b16 %v464
        %v589 = vunpack.c.l.b16 %v465
        %v590 = vunpack.c.h.b16 %v465
        %v591 = vunpack.c.l.b16 %v466
        %v592 = vunpack.c.h.b16 %v466
        %v593 = vunpack.c.l.b16 %v467
        %v594 = vunpack.c.h.b16 %v467
        %v595 = vunpack.c.l.b16 %v468
        %v596 = vunpack.c.h.b16 %v468
        %v597 = vpack.c.b16 %v535, %v533
        %v598 = vpack.c.b16 %v536, %v534
        %v599 = vpack.c.b16 %v539, %v537
        %v600 = vpack.c.b16 %v540, %v538
        %v601 = vpack.c.b16 %v543, %v541
        %v602 = vpack.c.b16 %v544, %v542
        %v603 = vpack.c.b16 %v547, %v545
        %v604 = vpack.c.b16 %v548, %v546
        %v605 = vpack.c.b16 %v551, %v549
        %v606 = vpack.c.b16 %v552, %v550
        %v607 = vpack.c.b16 %v555, %v553
        %v608 = vpack.c.b16 %v556, %v554
        %v609 = vpack.c.b16 %v559, %v557
        %v610 = vpack.c.b16 %v560, %v558
        %v611 = vpack.c.b16 %v563, %v561
        %v612 = vpack.c.b16 %v564, %v562
        %v613 = vpack.c.b16 %v567, %v565
        %v614 = vpack.c.b16 %v568, %v566
        %v615 = vpack.c.b16 %v571, %v569
        %v616 = vpack.c.b16 %v572, %v570
        %v617 = vpack.c.b16 %v575, %v573
        %v618 = vpack.c.b16 %v576, %v574
        %v619 = vpack.c.b16 %v579, %v577
        %v620 = vpack.c.b16 %v580, %v578
        %v621 = vpack.c.b16 %v583, %v581
        %v622 = vpack.c.b16 %v584, %v582
        %v623 = vpack.c.b16 %v587, %v585
        %v624 = vpack.c.b16 %v588, %v586
        %v625 = vpack.c.b16 %v591, %v589
        %v626 = vpack.c.b16 %v592, %v590
        %v627 = vpack.c.b16 %v595, %v593
        %v628 = vpack.c.b16 %v596, %v594
        %v693 = vunpack.c.l.b16 %v469
        %v694 = vunpack.c.h.b16 %v469
        %v695 = vunpack.c.l.b16 %v470
        %v696 = vunpack.c.h.b16 %v470
        %v697 = vunpack.c.l.b16 %v471
        %v698 = vunpack.c.h.b16 %v471
        %v699 = vunpack.c.l.b16 %v472
        %v700 = vunpack.c.h.b16 %v472
        %v701 = vunpack.c.l.b16 %v473
        %v702 = vunpack.c.h.b16 %v473
        %v703 = vunpack.c.l.b16 %v474
        %v704 = vunpack.c.h.b16 %v474
        %v705 = vunpack.c.l.b16 %v475
        %v706 = vunpack.c.h.b16 %v475
        %v707 = vunpack.c.l.b16 %v476
        %v708 = vunpack.c.h.b16 %v476
        %v709 = vunpack.c.l.b16 %v477
        %v710 = vunpack.c.h.b16 %v477
        %v711 = vunpack.c.l.b16 %v478
        %v712 = vunpack.c.h.b16 %v478
        %v713 = vunpack.c.l.b16 %v479
        %v714 = vunpack.c.h.b16 %v479
        %v715 = vunpack.c.l.b16 %v480
        %v716 = vunpack.c.h.b16 %v480
        %v717 = vunpack.c.l.b16 %v481
        %v718 = vunpack.c.h.b16 %v481
        %v719 = vunpack.c.l.b16 %v482
        %v720 = vunpack.c.h.b16 %v482
        %v721 = vunpack.c.l.b16 %v483
        %v722 = vunpack.c.h.b16 %v483
        %v723 = vunpack.c.l.b16 %v484
        %v724 = vunpack.c.h.b16 %v484
        %v725 = vunpack.c.l.b16 %v485
        %v726 = vunpack.c.h.b16 %v485
        %v727 = vunpack.c.l.b16 %v486
        %v728 = vunpack.c.h.b16 %v486
        %v729 = vunpack.c.l.b16 %v487
        %v730 = vunpack.c.h.b16 %v487
        %v731 = vunpack.c.l.b16 %v488
        %v732 = vunpack.c.h.b16 %v488
        %v733 = vunpack.c.l.b16 %v489
        %v734 = vunpack.c.h.b16 %v489
        %v735 = vunpack.c.l.b16 %v490
        %v736 = vunpack.c.h.b16 %v490
        %v737 = vunpack.c.l.b16 %v491
        %v738 = vunpack.c.h.b16 %v491
        %v739 = vunpack.c.l.b16 %v492
        %v740 = vunpack.c.h.b16 %v492
        %v741 = vunpack.c.l.b16 %v493
        %v742 = vunpack.c.h.b16 %v493
        %v743 = vunpack.c.l.b16 %v494
        %v744 = vunpack.c.h.b16 %v494
        %v745 = vunpack.c.l.b16 %v495
        %v746 = vunpack.c.h.b16 %v495
        %v747 = vunpack.c.l.b16 %v496
        %v748 = vunpack.c.h.b16 %v496
        %v749 = vunpack.c.l.b16 %v497
        %v750 = vunpack.c.h.b16 %v497
        %v751 = vunpack.c.l.b16 %v498
        %v752 = vunpack.c.h.b16 %v498
        %v753 = vunpack.c.l.b16 %v499
        %v754 = vunpack.c.h.b16 %v499
        %v755 = vunpack.c.l.b16 %v500
        %v756 = vunpack.c.h.b16 %v500
        %v757 = vpack.c.b16 %v695, %v693
        %v758 = vpack.c.b16 %v696, %v694
        %v759 = vpack.c.b16 %v699, %v697
        %v760 = vpack.c.b16 %v700, %v698
        %v761 = vpack.c.b16 %v703, %v701
        %v762 = vpack.c.b16 %v704, %v702
        %v763 = vpack.c.b16 %v707, %v705
        %v764 = vpack.c.b16 %v708, %v706
        %v765 = vpack.c.b16 %v711, %v709
        %v766 = vpack.c.b16 %v712, %v710
        %v767 = vpack.c.b16 %v715, %v713
        %v768 = vpack.c.b16 %v716, %v714
        %v769 = vpack.c.b16 %v719, %v717
        %v770 = vpack.c.b16 %v720, %v718
        %v771 = vpack.c.b16 %v723, %v721
        %v772 = vpack.c.b16 %v724, %v722
        %v773 = vpack.c.b16 %v727, %v725
        %v774 = vpack.c.b16 %v728, %v726
        %v775 = vpack.c.b16 %v731, %v729
        %v776 = vpack.c.b16 %v732, %v730
        %v777 = vpack.c.b16 %v735, %v733
        %v778 = vpack.c.b16 %v736, %v734
        %v779 = vpack.c.b16 %v739, %v737
        %v780 = vpack.c.b16 %v740, %v738
        %v781 = vpack.c.b16 %v743, %v741
        %v782 = vpack.c.b16 %v744, %v742
        %v783 = vpack.c.b16 %v747, %v745
        %v784 = vpack.c.b16 %v748, %v746
        %v785 = vpack.c.b16 %v751, %v749
        %v786 = vpack.c.b16 %v752, %v750
        %v787 = vpack.c.b16 %v755, %v753
        %v788 = vpack.c.b16 %v756, %v754
        %821 = vmatprep.subr.bf16.mxu0 %v758
        %822 = vmatpush1.bf16.msra.mxu0 %v757
        %823 = vmatprep.subr.bf16.mxu0 %v760
        %824 = vmatpush1.bf16.msra.mxu0 %v759
        %825 = vmatprep.subr.bf16.mxu0 %v762
        %826 = vmatpush1.bf16.msra.mxu0 %v761
        %827 = vmatprep.subr.bf16.mxu0 %v764
        %828 = vmatpush1.bf16.msra.mxu0 %v763
        %829 = vmatprep.subr.bf16.mxu0 %v766
        %830 = vmatpush1.bf16.msra.mxu0 %v765
        %831 = vmatprep.subr.bf16.mxu0 %v768
        %832 = vmatpush1.bf16.msra.mxu0 %v767
        %833 = vmatprep.subr.bf16.mxu0 %v770
        %834 = vmatpush1.bf16.msra.mxu0 %v769
        %835 = vmatprep.subr.bf16.mxu0 %v772
        %836 = vmatpush1.bf16.msra.mxu0 %v771
        %837 = vmatprep.subr.bf16.mxu0 %v774
        %838 = vmatpush1.bf16.msra.mxu0 %v773
        %839 = vmatprep.subr.bf16.mxu0 %v776
        %840 = vmatpush1.bf16.msra.mxu0 %v775
        %841 = vmatprep.subr.bf16.mxu0 %v778
        %842 = vmatpush1.bf16.msra.mxu0 %v777
        %843 = vmatprep.subr.bf16.mxu0 %v780
        %844 = vmatpush1.bf16.msra.mxu0 %v779
        %845 = vmatprep.subr.bf16.mxu0 %v782
        %846 = vmatpush1.bf16.msra.mxu0 %v781
        %847 = vmatprep.subr.bf16.mxu0 %v784
        %848 = vmatpush1.bf16.msra.mxu0 %v783
        %849 = vmatprep.subr.bf16.mxu0 %v786
        %850 = vmatpush1.bf16.msra.mxu0 %v785
        %851 = vmatprep.subr.bf16.mxu0 %v788
        %852 = vmatpush1.bf16.msra.mxu0 %v787
        %853 = vmatprep.mubr.bf16.mxu0 %v598
        %854 = vmatmul.mubr.bf16.gmra.mrb[0].mxu0 %v597
        %v855 = vpop.f32.mrb[0].mxu0
        %v856 = vadd.f32 0.0, %v855
        %v857 = vpop.f32.mrb[0].mxu0
        %v858 = vadd.f32 0.0, %v857
        %v859 = vpop.f32.mrb[0].mxu0
        %v860 = vadd.f32 0.0, %v859
        %v861 = vpop.f32.mrb[0].mxu0
        %v862 = vadd.f32 0.0, %v861
        %863 = vmatprep.mubr.bf16.mxu0 %v600
        %864 = vmatmul.mubr.bf16.gmra.mrb[0].mxu0 %v599
        %v865 = vpop.f32.mrb[0].mxu0
        %v866 = vadd.f32 0.0, %v865
        %v867 = vpop.f32.mrb[0].mxu0
        %v868 = vadd.f32 0.0, %v867
        %v869 = vpop.f32.mrb[0].mxu0
        %v870 = vadd.f32 0.0, %v869
        %v871 = vpop.f32.mrb[0].mxu0
        %v872 = vadd.f32 0.0, %v871
        %873 = vmatprep.mubr.bf16.mxu0 %v602
        %874 = vmatmul.mubr.bf16.gmra.mrb[0].mxu0 %v601
        %v875 = vpop.f32.mrb[0].mxu0
        %v876 = vadd.f32 0.0, %v875
        %v877 = vpop.f32.mrb[0].mxu0
        %v878 = vadd.f32 0.0, %v877
        %v879 = vpop.f32.mrb[0].mxu0
        %v880 = vadd.f32 0.0, %v879
        %v881 = vpop.f32.mrb[0].mxu0
        %v882 = vadd.f32 0.0, %v881
        %883 = vmatprep.mubr.bf16.mxu0 %v604
        %884 = vmatmul.mubr.bf16.gmra.mrb[0].mxu0 %v603
        %v885 = vpop.f32.mrb[0].mxu0
        %v886 = vadd.f32 0.0, %v885
        %v887 = vpop.f32.mrb[0].mxu0
        %v888 = vadd.f32 0.0, %v887
        %v889 = vpop.f32.mrb[0].mxu0
        %v890 = vadd.f32 0.0, %v889
        %v891 = vpop.f32.mrb[0].mxu0
        %v892 = vadd.f32 0.0, %v891
        %893 = vmatprep.mubr.bf16.mxu0 %v606
        %894 = vmatmul.mubr.bf16.gmra.mrb[0].mxu0 %v605
        %v895 = vpop.f32.mrb[0].mxu0
        %v896 = vadd.f32 0.0, %v895
        %v897 = vpop.f32.mrb[0].mxu0
        %v898 = vadd.f32 0.0, %v897
        %v899 = vpop.f32.mrb[0].mxu0
        %v900 = vadd.f32 0.0, %v899
        %v901 = vpop.f32.mrb[0].mxu0
        %v902 = vadd.f32 0.0, %v901
        %903 = vmatprep.mubr.bf16.mxu0 %v608
        %904 = vmatmul.mubr.bf16.gmra.mrb[0].mxu0 %v607
        %v905 = vpop.f32.mrb[0].mxu0
        %v906 = vadd.f32 0.0, %v905
        %v907 = vpop.f32.mrb[0].mxu0
        %v908 = vadd.f32 0.0, %v907
        %v909 = vpop.f32.mrb[0].mxu0
        %v910 = vadd.f32 0.0, %v909
        %v911 = vpop.f32.mrb[0].mxu0
        %v912 = vadd.f32 0.0, %v911
        %913 = vmatprep.mubr.bf16.mxu0 %v610
        %914 = vmatmul.mubr.bf16.gmra.mrb[0].mxu0 %v609
        %v915 = vpop.f32.mrb[0].mxu0
        %v916 = vadd.f32 0.0, %v915
        %v917 = vpop.f32.mrb[0].mxu0
        %v918 = vadd.f32 0.0, %v917
        %v919 = vpop.f32.mrb[0].mxu0
        %v920 = vadd.f32 0.0, %v919
        %v921 = vpop.f32.mrb[0].mxu0
        %v922 = vadd.f32 0.0, %v921
        %923 = vmatprep.mubr.bf16.mxu0 %v612
        %924 = vmatmul.mubr.bf16.gmra.mrb[0].mxu0 %v611
        %v925 = vpop.f32.mrb[0].mxu0
        %v926 = vadd.f32 0.0, %v925
        %v927 = vpop.f32.mrb[0].mxu0
        %v928 = vadd.f32 0.0, %v927
        %v929 = vpop.f32.mrb[0].mxu0
        %v930 = vadd.f32 0.0, %v929
        %v931 = vpop.f32.mrb[0].mxu0
        %v932 = vadd.f32 0.0, %v931
        %933 = vmatprep.mubr.bf16.mxu0 %v614
        %934 = vmatmul.mubr.bf16.gmra.mrb[0].mxu0 %v613
        %v935 = vpop.f32.mrb[0].mxu0
        %v936 = vadd.f32 0.0, %v935
        %v937 = vpop.f32.mrb[0].mxu0
        %v938 = vadd.f32 0.0, %v937
        %v939 = vpop.f32.mrb[0].mxu0
        %v940 = vadd.f32 0.0, %v939
        %v941 = vpop.f32.mrb[0].mxu0
        %v942 = vadd.f32 0.0, %v941
        %943 = vmatprep.mubr.bf16.mxu0 %v616
        %944 = vmatmul.mubr.bf16.gmra.mrb[0].mxu0 %v615
        %v945 = vpop.f32.mrb[0].mxu0
        %v946 = vadd.f32 0.0, %v945
        %v947 = vpop.f32.mrb[0].mxu0
        %v948 = vadd.f32 0.0, %v947
        %v949 = vpop.f32.mrb[0].mxu0
        %v950 = vadd.f32 0.0, %v949
        %v951 = vpop.f32.mrb[0].mxu0
        %v952 = vadd.f32 0.0, %v951
        %953 = vmatprep.mubr.bf16.mxu0 %v618
        %954 = vmatmul.mubr.bf16.gmra.mrb[0].mxu0 %v617
        %v955 = vpop.f32.mrb[0].mxu0
        %v956 = vadd.f32 0.0, %v955
        %v957 = vpop.f32.mrb[0].mxu0
        %v958 = vadd.f32 0.0, %v957
        %v959 = vpop.f32.mrb[0].mxu0
        %v960 = vadd.f32 0.0, %v959
        %v961 = vpop.f32.mrb[0].mxu0
        %v962 = vadd.f32 0.0, %v961
        %963 = vmatprep.mubr.bf16.mxu0 %v620
        %964 = vmatmul.mubr.bf16.gmra.mrb[0].mxu0 %v619
        %v965 = vpop.f32.mrb[0].mxu0
        %v966 = vadd.f32 0.0, %v965
        %v967 = vpop.f32.mrb[0].mxu0
        %v968 = vadd.f32 0.0, %v967
        %v969 = vpop.f32.mrb[0].mxu0
        %v970 = vadd.f32 0.0, %v969
        %v971 = vpop.f32.mrb[0].mxu0
        %v972 = vadd.f32 0.0, %v971
        %973 = vmatprep.mubr.bf16.mxu0 %v622
        %974 = vmatmul.mubr.bf16.gmra.mrb[0].mxu0 %v621
        %v975 = vpop.f32.mrb[0].mxu0
        %v976 = vadd.f32 0.0, %v975
        %v977 = vpop.f32.mrb[0].mxu0
        %v978 = vadd.f32 0.0, %v977
        %v979 = vpop.f32.mrb[0].mxu0
        %v980 = vadd.f32 0.0, %v979
        %v981 = vpop.f32.mrb[0].mxu0
        %v982 = vadd.f32 0.0, %v981
        %983 = vmatprep.mubr.bf16.mxu0 %v624
        %984 = vmatmul.mubr.bf16.gmra.mrb[0].mxu0 %v623
        %v985 = vpop.f32.mrb[0].mxu0
        %v986 = vadd.f32 0.0, %v985
        %v987 = vpop.f32.mrb[0].mxu0
        %v988 = vadd.f32 0.0, %v987
        %v989 = vpop.f32.mrb[0].mxu0
        %v990 = vadd.f32 0.0, %v989
        %v991 = vpop.f32.mrb[0].mxu0
        %v992 = vadd.f32 0.0, %v991
        %993 = vmatprep.mubr.bf16.mxu0 %v626
        %994 = vmatmul.mubr.bf16.gmra.mrb[0].mxu0 %v625
        %v995 = vpop.f32.mrb[0].mxu0
        %v996 = vadd.f32 0.0, %v995
        %v997 = vpop.f32.mrb[0].mxu0
        %v998 = vadd.f32 0.0, %v997
        %v999 = vpop.f32.mrb[0].mxu0
        %v1000 = vadd.f32 0.0, %v999
        %v1001 = vpop.f32.mrb[0].mxu0
        %v1002 = vadd.f32 0.0, %v1001
        %1003 = vmatprep.mubr.bf16.mxu0 %v628
        %1004 = vmatmul.mubr.bf16.gmra.mrb[0].mxu0 %v627
        %v1005 = vpop.f32.mrb[0].mxu0
        %v1006 = vadd.f32 0.0, %v1005
        %v1007 = vpop.f32.mrb[0].mxu0
        %v1008 = vadd.f32 0.0, %v1007
        %v1009 = vpop.f32.mrb[0].mxu0
        %v1010 = vadd.f32 0.0, %v1009
        %v1011 = vpop.f32.mrb[0].mxu0
        %v1012 = vadd.f32 0.0, %v1011
        %1013 = vdwg.mxu0
        %v1014 = vld [vmem:[%s305] sm:$0xff]
        %v1015 = vld [vmem:[%s305 + $0x8] sm:$0xff]
        %v1016 = vld [vmem:[%s305 + $0x10] sm:$0xff]
        %v1017 = vld [vmem:[%s305 + $0x18] sm:$0xff]
        %v1018 = vld [vmem:[%s305 + $0x20] sm:$0xff]
        %v1019 = vld [vmem:[%s305 + $0x28] sm:$0xff]
        %v1020 = vld [vmem:[%s305 + $0x30] sm:$0xff]
        %v1021 = vld [vmem:[%s305 + $0x38] sm:$0xff]
        %v1022 = vld [vmem:[%s305 + $0x40] sm:$0xff]
        %v1023 = vld [vmem:[%s305 + $0x48] sm:$0xff]
        %v1024 = vld [vmem:[%s305 + $0x50] sm:$0xff]
        %v1025 = vld [vmem:[%s305 + $0x58] sm:$0xff]
        %v1026 = vld [vmem:[%s305 + $0x60] sm:$0xff]
        %v1027 = vld [vmem:[%s305 + $0x68] sm:$0xff]
        %v1028 = vld [vmem:[%s305 + $0x70] sm:$0xff]
        %v1029 = vld [vmem:[%s305 + $0x78] sm:$0xff]
        %v1030 = vld [vmem:[%s305 + $0x80] sm:$0xff]
        %v1031 = vld [vmem:[%s305 + $0x88] sm:$0xff]
        %v1032 = vld [vmem:[%s305 + $0x90] sm:$0xff]
        %v1033 = vld [vmem:[%s305 + $0x98] sm:$0xff]
        %v1034 = vld [vmem:[%s305 + $0xa0] sm:$0xff]
        %v1035 = vld [vmem:[%s305 + $0xa8] sm:$0xff]
        %v1036 = vld [vmem:[%s305 + $0xb0] sm:$0xff]
        %v1037 = vld [vmem:[%s305 + $0xb8] sm:$0xff]
        %v1038 = vld [vmem:[%s305 + $0xc0] sm:$0xff]
        %v1039 = vld [vmem:[%s305 + $0xc8] sm:$0xff]
        %v1040 = vld [vmem:[%s305 + $0xd0] sm:$0xff]
        %v1041 = vld [vmem:[%s305 + $0xd8] sm:$0xff]
        %v1042 = vld [vmem:[%s305 + $0xe0] sm:$0xff]
        %v1043 = vld [vmem:[%s305 + $0xe8] sm:$0xff]
        %v1044 = vld [vmem:[%s305 + $0xf0] sm:$0xff]
        %v1045 = vld [vmem:[%s305 + $0xf8] sm:$0xff]
        %v1078 = vunpack.c.l.b16 %v1014
        %v1079 = vunpack.c.h.b16 %v1014
        %v1080 = vunpack.c.l.b16 %v1015
        %v1081 = vunpack.c.h.b16 %v1015
        %v1082 = vunpack.c.l.b16 %v1016
        %v1083 = vunpack.c.h.b16 %v1016
        %v1084 = vunpack.c.l.b16 %v1017
        %v1085 = vunpack.c.h.b16 %v1017
        %v1086 = vunpack.c.l.b16 %v1018
        %v1087 = vunpack.c.h.b16 %v1018
        %v1088 = vunpack.c.l.b16 %v1019
        %v1089 = vunpack.c.h.b16 %v1019
        %v1090 = vunpack.c.l.b16 %v1020
        %v1091 = vunpack.c.h.b16 %v1020
        %v1092 = vunpack.c.l.b16 %v1021
        %v1093 = vunpack.c.h.b16 %v1021
        %v1094 = vunpack.c.l.b16 %v1022
        %v1095 = vunpack.c.h.b16 %v1022
        %v1096 = vunpack.c.l.b16 %v1023
        %v1097 = vunpack.c.h.b16 %v1023
        %v1098 = vunpack.c.l.b16 %v1024
        %v1099 = vunpack.c.h.b16 %v1024
        %v1100 = vunpack.c.l.b16 %v1025
        %v1101 = vunpack.c.h.b16 %v1025
        %v1102 = vunpack.c.l.b16 %v1026
        %v1103 = vunpack.c.h.b16 %v1026
        %v1104 = vunpack.c.l.b16 %v1027
        %v1105 = vunpack.c.h.b16 %v1027
        %v1106 = vunpack.c.l.b16 %v1028
        %v1107 = vunpack.c.h.b16 %v1028
        %v1108 = vunpack.c.l.b16 %v1029
        %v1109 = vunpack.c.h.b16 %v1029
        %v1110 = vunpack.c.l.b16 %v1030
        %v1111 = vunpack.c.h.b16 %v1030
        %v1112 = vunpack.c.l.b16 %v1031
        %v1113 = vunpack.c.h.b16 %v1031
        %v1114 = vunpack.c.l.b16 %v1032
        %v1115 = vunpack.c.h.b16 %v1032
        %v1116 = vunpack.c.l.b16 %v1033
        %v1117 = vunpack.c.h.b16 %v1033
        %v1118 = vunpack.c.l.b16 %v1034
        %v1119 = vunpack.c.h.b16 %v1034
        %v1120 = vunpack.c.l.b16 %v1035
        %v1121 = vunpack.c.h.b16 %v1035
        %v1122 = vunpack.c.l.b16 %v1036
        %v1123 = vunpack.c.h.b16 %v1036
        %v1124 = vunpack.c.l.b16 %v1037
        %v1125 = vunpack.c.h.b16 %v1037
        %v1126 = vunpack.c.l.b16 %v1038
        %v1127 = vunpack.c.h.b16 %v1038
        %v1128 = vunpack.c.l.b16 %v1039
        %v1129 = vunpack.c.h.b16 %v1039
        %v1130 = vunpack.c.l.b16 %v1040
        %v1131 = vunpack.c.h.b16 %v1040
        %v1132 = vunpack.c.l.b16 %v1041
        %v1133 = vunpack.c.h.b16 %v1041
        %v1134 = vunpack.c.l.b16 %v1042
        %v1135 = vunpack.c.h.b16 %v1042
        %v1136 = vunpack.c.l.b16 %v1043
        %v1137 = vunpack.c.h.b16 %v1043
        %v1138 = vunpack.c.l.b16 %v1044
        %v1139 = vunpack.c.h.b16 %v1044
        %v1140 = vunpack.c.l.b16 %v1045
        %v1141 = vunpack.c.h.b16 %v1045
        %v1142 = vpack.c.b16 %v1080, %v1078
        %v1143 = vpack.c.b16 %v1081, %v1079
        %v1144 = vpack.c.b16 %v1084, %v1082
        %v1145 = vpack.c.b16 %v1085, %v1083
        %v1146 = vpack.c.b16 %v1088, %v1086
        %v1147 = vpack.c.b16 %v1089, %v1087
        %v1148 = vpack.c.b16 %v1092, %v1090
        %v1149 = vpack.c.b16 %v1093, %v1091
        %v1150 = vpack.c.b16 %v1096, %v1094
        %v1151 = vpack.c.b16 %v1097, %v1095
        %v1152 = vpack.c.b16 %v1100, %v1098
        %v1153 = vpack.c.b16 %v1101, %v1099
        %v1154 = vpack.c.b16 %v1104, %v1102
        %v1155 = vpack.c.b16 %v1105, %v1103
        %v1156 = vpack.c.b16 %v1108, %v1106
        %v1157 = vpack.c.b16 %v1109, %v1107
        %v1158 = vpack.c.b16 %v1112, %v1110
        %v1159 = vpack.c.b16 %v1113, %v1111
        %v1160 = vpack.c.b16 %v1116, %v1114
        %v1161 = vpack.c.b16 %v1117, %v1115
        %v1162 = vpack.c.b16 %v1120, %v1118
        %v1163 = vpack.c.b16 %v1121, %v1119
        %v1164 = vpack.c.b16 %v1124, %v1122
        %v1165 = vpack.c.b16 %v1125, %v1123
        %v1166 = vpack.c.b16 %v1128, %v1126
        %v1167 = vpack.c.b16 %v1129, %v1127
        %v1168 = vpack.c.b16 %v1132, %v1130
        %v1169 = vpack.c.b16 %v1133, %v1131
        %v1170 = vpack.c.b16 %v1136, %v1134
        %v1171 = vpack.c.b16 %v1137, %v1135
        %v1172 = vpack.c.b16 %v1140, %v1138
        %v1173 = vpack.c.b16 %v1141, %v1139
        %1206 = vmatprep.subr.bf16.mxu0 %v1143
        %1207 = vmatpush1.bf16.msra.mxu0 %v1142
        %1208 = vmatprep.subr.bf16.mxu0 %v1145
        %1209 = vmatpush1.bf16.msra.mxu0 %v1144
        %1210 = vmatprep.subr.bf16.mxu0 %v1147
        %1211 = vmatpush1.bf16.msra.mxu0 %v1146
        %1212 = vmatprep.subr.bf16.mxu0 %v1149
        %1213 = vmatpush1.bf16.msra.mxu0 %v1148
        %1214 = vmatprep.subr.bf16.mxu0 %v1151
        %1215 = vmatpush1.bf16.msra.mxu0 %v1150
        %1216 = vmatprep.subr.bf16.mxu0 %v1153
        %1217 = vmatpush1.bf16.msra.mxu0 %v1152
        %1218 = vmatprep.subr.bf16.mxu0 %v1155
        %1219 = vmatpush1.bf16.msra.mxu0 %v1154
        %1220 = vmatprep.subr.bf16.mxu0 %v1157
        %1221 = vmatpush1.bf16.msra.mxu0 %v1156
        %1222 = vmatprep.subr.bf16.mxu0 %v1159
        %1223 = vmatpush1.bf16.msra.mxu0 %v1158
        %1224 = vmatprep.subr.bf16.mxu0 %v1161
        %1225 = vmatpush1.bf16.msra.mxu0 %v1160
        %1226 = vmatprep.subr.bf16.mxu0 %v1163
        %1227 = vmatpush1.bf16.msra.mxu0 %v1162
        %1228 = vmatprep.subr.bf16.mxu0 %v1165
        %1229 = vmatpush1.bf16.msra.mxu0 %v1164
        %1230 = vmatprep.subr.bf16.mxu0 %v1167
        %1231 = vmatpush1.bf16.msra.mxu0 %v1166
        %1232 = vmatprep.subr.bf16.mxu0 %v1169
        %1233 = vmatpush1.bf16.msra.mxu0 %v1168
        %1234 = vmatprep.subr.bf16.mxu0 %v1171
        %1235 = vmatpush1.bf16.msra.mxu0 %v1170
        %1236 = vmatprep.subr.bf16.mxu0 %v1173
        %1237 = vmatpush1.bf16.msra.mxu0 %v1172
        %1238 = vmatprep.mubr.bf16.mxu0 %v598
        %1239 = vmatmul.mubr.bf16.gmra.mrb[0].mxu0 %v597
        %v1240 = vpop.f32.mrb[0].mxu0
        %v1241 = vadd.f32 0.0, %v1240
        %v1242 = vpop.f32.mrb[0].mxu0
        %v1243 = vadd.f32 0.0, %v1242
        %v1244 = vpop.f32.mrb[0].mxu0
        %v1245 = vadd.f32 0.0, %v1244
        %v1246 = vpop.f32.mrb[0].mxu0
        %v1247 = vadd.f32 0.0, %v1246
        %1248 = vmatprep.mubr.bf16.mxu0 %v600
        %1249 = vmatmul.mubr.bf16.gmra.mrb[0].mxu0 %v599
        %v1250 = vpop.f32.mrb[0].mxu0
        %v1251 = vadd.f32 0.0, %v1250
        %v1252 = vpop.f32.mrb[0].mxu0
        %v1253 = vadd.f32 0.0, %v1252
        %v1254 = vpop.f32.mrb[0].mxu0
        %v1255 = vadd.f32 0.0, %v1254
        %v1256 = vpop.f32.mrb[0].mxu0
        %v1257 = vadd.f32 0.0, %v1256
        %1258 = vmatprep.mubr.bf16.mxu0 %v602
        %1259 = vmatmul.mubr.bf16.gmra.mrb[0].mxu0 %v601
        %v1260 = vpop.f32.mrb[0].mxu0
        %v1261 = vadd.f32 0.0, %v1260
        %v1262 = vpop.f32.mrb[0].mxu0
        %v1263 = vadd.f32 0.0, %v1262
        %v1264 = vpop.f32.mrb[0].mxu0
        %v1265 = vadd.f32 0.0, %v1264
        %v1266 = vpop.f32.mrb[0].mxu0
        %v1267 = vadd.f32 0.0, %v1266
        %1268 = vmatprep.mubr.bf16.mxu0 %v604
        %1269 = vmatmul.mubr.bf16.gmra.mrb[0].mxu0 %v603
        %v1270 = vpop.f32.mrb[0].mxu0
        %v1271 = vadd.f32 0.0, %v1270
        %v1272 = vpop.f32.mrb[0].mxu0
        %v1273 = vadd.f32 0.0, %v1272
        %v1274 = vpop.f32.mrb[0].mxu0
        %v1275 = vadd.f32 0.0, %v1274
        %v1276 = vpop.f32.mrb[0].mxu0
        %v1277 = vadd.f32 0.0, %v1276
        %1278 = vmatprep.mubr.bf16.mxu0 %v606
        %1279 = vmatmul.mubr.bf16.gmra.mrb[0].mxu0 %v605
        %v1280 = vpop.f32.mrb[0].mxu0
        %v1281 = vadd.f32 0.0, %v1280
        %v1282 = vpop.f32.mrb[0].mxu0
        %v1283 = vadd.f32 0.0, %v1282
        %v1284 = vpop.f32.mrb[0].mxu0
        %v1285 = vadd.f32 0.0, %v1284
        %v1286 = vpop.f32.mrb[0].mxu0
        %v1287 = vadd.f32 0.0, %v1286
        %1288 = vmatprep.mubr.bf16.mxu0 %v608
        %1289 = vmatmul.mubr.bf16.gmra.mrb[0].mxu0 %v607
        %v1290 = vpop.f32.mrb[0].mxu0
        %v1291 = vadd.f32 0.0, %v1290
        %v1292 = vpop.f32.mrb[0].mxu0
        %v1293 = vadd.f32 0.0, %v1292
        %v1294 = vpop.f32.mrb[0].mxu0
        %v1295 = vadd.f32 0.0, %v1294
        %v1296 = vpop.f32.mrb[0].mxu0
        %v1297 = vadd.f32 0.0, %v1296
        %1298 = vmatprep.mubr.bf16.mxu0 %v610
        %1299 = vmatmul.mubr.bf16.gmra.mrb[0].mxu0 %v609
        %v1300 = vpop.f32.mrb[0].mxu0
        %v1301 = vadd.f32 0.0, %v1300
        %v1302 = vpop.f32.mrb[0].mxu0
        %v1303 = vadd.f32 0.0, %v1302
        %v1304 = vpop.f32.mrb[0].mxu0
        %v1305 = vadd.f32 0.0, %v1304
        %v1306 = vpop.f32.mrb[0].mxu0
        %v1307 = vadd.f32 0.0, %v1306
        %1308 = vmatprep.mubr.bf16.mxu0 %v612
        %1309 = vmatmul.mubr.bf16.gmra.mrb[0].mxu0 %v611
        %v1310 = vpop.f32.mrb[0].mxu0
        %v1311 = vadd.f32 0.0, %v1310
        %v1312 = vpop.f32.mrb[0].mxu0
        %v1313 = vadd.f32 0.0, %v1312
        %v1314 = vpop.f32.mrb[0].mxu0
        %v1315 = vadd.f32 0.0, %v1314
        %v1316 = vpop.f32.mrb[0].mxu0
        %v1317 = vadd.f32 0.0, %v1316
        %1318 = vmatprep.mubr.bf16.mxu0 %v614
        %1319 = vmatmul.mubr.bf16.gmra.mrb[0].mxu0 %v613
        %v1320 = vpop.f32.mrb[0].mxu0
        %v1321 = vadd.f32 0.0, %v1320
        %v1322 = vpop.f32.mrb[0].mxu0
        %v1323 = vadd.f32 0.0, %v1322
        %v1324 = vpop.f32.mrb[0].mxu0
        %v1325 = vadd.f32 0.0, %v1324
        %v1326 = vpop.f32.mrb[0].mxu0
        %v1327 = vadd.f32 0.0, %v1326
        %1328 = vmatprep.mubr.bf16.mxu0 %v616
        %1329 = vmatmul.mubr.bf16.gmra.mrb[0].mxu0 %v615
        %v1330 = vpop.f32.mrb[0].mxu0
        %v1331 = vadd.f32 0.0, %v1330
        %v1332 = vpop.f32.mrb[0].mxu0
        %v1333 = vadd.f32 0.0, %v1332
        %v1334 = vpop.f32.mrb[0].mxu0
        %v1335 = vadd.f32 0.0, %v1334
        %v1336 = vpop.f32.mrb[0].mxu0
        %v1337 = vadd.f32 0.0, %v1336
        %1338 = vmatprep.mubr.bf16.mxu0 %v618
        %1339 = vmatmul.mubr.bf16.gmra.mrb[0].mxu0 %v617
        %v1340 = vpop.f32.mrb[0].mxu0
        %v1341 = vadd.f32 0.0, %v1340
        %v1342 = vpop.f32.mrb[0].mxu0
        %v1343 = vadd.f32 0.0, %v1342
        %v1344 = vpop.f32.mrb[0].mxu0
        %v1345 = vadd.f32 0.0, %v1344
        %v1346 = vpop.f32.mrb[0].mxu0
        %v1347 = vadd.f32 0.0, %v1346
        %1348 = vmatprep.mubr.bf16.mxu0 %v620
        %1349 = vmatmul.mubr.bf16.gmra.mrb[0].mxu0 %v619
        %v1350 = vpop.f32.mrb[0].mxu0
        %v1351 = vadd.f32 0.0, %v1350
        %v1352 = vpop.f32.mrb[0].mxu0
        %v1353 = vadd.f32 0.0, %v1352
        %v1354 = vpop.f32.mrb[0].mxu0
        %v1355 = vadd.f32 0.0, %v1354
        %v1356 = vpop.f32.mrb[0].mxu0
        %v1357 = vadd.f32 0.0, %v1356
        %1358 = vmatprep.mubr.bf16.mxu0 %v622
        %1359 = vmatmul.mubr.bf16.gmra.mrb[0].mxu0 %v621
        %v1360 = vpop.f32.mrb[0].mxu0
        %v1361 = vadd.f32 0.0, %v1360
        %v1362 = vpop.f32.mrb[0].mxu0
        %v1363 = vadd.f32 0.0, %v1362
        %v1364 = vpop.f32.mrb[0].mxu0
        %v1365 = vadd.f32 0.0, %v1364
        %v1366 = vpop.f32.mrb[0].mxu0
        %v1367 = vadd.f32 0.0, %v1366
        %1368 = vmatprep.mubr.bf16.mxu0 %v624
        %1369 = vmatmul.mubr.bf16.gmra.mrb[0].mxu0 %v623
        %v1370 = vpop.f32.mrb[0].mxu0
        %v1371 = vadd.f32 0.0, %v1370
        %v1372 = vpop.f32.mrb[0].mxu0
        %v1373 = vadd.f32 0.0, %v1372
        %v1374 = vpop.f32.mrb[0].mxu0
        %v1375 = vadd.f32 0.0, %v1374
        %v1376 = vpop.f32.mrb[0].mxu0
        %v1377 = vadd.f32 0.0, %v1376
        %1378 = vmatprep.mubr.bf16.mxu0 %v626
        %1379 = vmatmul.mubr.bf16.gmra.mrb[0].mxu0 %v625
        %v1380 = vpop.f32.mrb[0].mxu0
        %v1381 = vadd.f32 0.0, %v1380
        %v1382 = vpop.f32.mrb[0].mxu0
        %v1383 = vadd.f32 0.0, %v1382
        %v1384 = vpop.f32.mrb[0].mxu0
        %v1385 = vadd.f32 0.0, %v1384
        %v1386 = vpop.f32.mrb[0].mxu0
        %v1387 = vadd.f32 0.0, %v1386
        %1388 = vmatprep.mubr.bf16.mxu0 %v628
        %1389 = vmatmul.mubr.bf16.gmra.mrb[0].mxu0 %v627
        %v1390 = vpop.f32.mrb[0].mxu0
        %v1391 = vadd.f32 0.0, %v1390
        %v1392 = vpop.f32.mrb[0].mxu0
        %v1393 = vadd.f32 0.0, %v1392
        %v1394 = vpop.f32.mrb[0].mxu0
        %v1395 = vadd.f32 0.0, %v1394
        %v1396 = vpop.f32.mrb[0].mxu0
        %v1397 = vadd.f32 0.0, %v1396
        %1398 = vdwg.mxu0
        %v1399 = vsub.f32 0.0, %v856
        %v1400 = vsub.f32 0.0, %v858
        %v1401 = vsub.f32 0.0, %v860
        %v1402 = vsub.f32 0.0, %v862
        %v1403 = vsub.f32 0.0, %v866
        %v1404 = vsub.f32 0.0, %v868
        %v1405 = vsub.f32 0.0, %v870
        %v1406 = vsub.f32 0.0, %v872
        %v1407 = vsub.f32 0.0, %v876
        %v1408 = vsub.f32 0.0, %v878
        %v1409 = vsub.f32 0.0, %v880
        %v1410 = vsub.f32 0.0, %v882
        %v1411 = vsub.f32 0.0, %v886
        %v1412 = vsub.f32 0.0, %v888
        %v1413 = vsub.f32 0.0, %v890
        %v1414 = vsub.f32 0.0, %v892
        %v1415 = vsub.f32 0.0, %v896
        %v1416 = vsub.f32 0.0, %v898
        %v1417 = vsub.f32 0.0, %v900
        %v1418 = vsub.f32 0.0, %v902
        %v1419 = vsub.f32 0.0, %v906
        %v1420 = vsub.f32 0.0, %v908
        %v1421 = vsub.f32 0.0, %v910
        %v1422 = vsub.f32 0.0, %v912
        %v1423 = vsub.f32 0.0, %v916
        %v1424 = vsub.f32 0.0, %v918
        %v1425 = vsub.f32 0.0, %v920
        %v1426 = vsub.f32 0.0, %v922
        %v1427 = vsub.f32 0.0, %v926
        %v1428 = vsub.f32 0.0, %v928
        %v1429 = vsub.f32 0.0, %v930
        %v1430 = vsub.f32 0.0, %v932
        %v1431 = vsub.f32 0.0, %v936
        %v1432 = vsub.f32 0.0, %v938
        %v1433 = vsub.f32 0.0, %v940
        %v1434 = vsub.f32 0.0, %v942
        %v1435 = vsub.f32 0.0, %v946
        %v1436 = vsub.f32 0.0, %v948
        %v1437 = vsub.f32 0.0, %v950
        %v1438 = vsub.f32 0.0, %v952
        %v1439 = vsub.f32 0.0, %v956
        %v1440 = vsub.f32 0.0, %v958
        %v1441 = vsub.f32 0.0, %v960
        %v1442 = vsub.f32 0.0, %v962
        %v1443 = vsub.f32 0.0, %v966
        %v1444 = vsub.f32 0.0, %v968
        %v1445 = vsub.f32 0.0, %v970
        %v1446 = vsub.f32 0.0, %v972
        %v1447 = vsub.f32 0.0, %v976
        %v1448 = vsub.f32 0.0, %v978
        %v1449 = vsub.f32 0.0, %v980
        %v1450 = vsub.f32 0.0, %v982
        %v1451 = vsub.f32 0.0, %v986
        %v1452 = vsub.f32 0.0, %v988
        %v1453 = vsub.f32 0.0, %v990
        %v1454 = vsub.f32 0.0, %v992
        %v1455 = vsub.f32 0.0, %v996
        %v1456 = vsub.f32 0.0, %v998
        %v1457 = vsub.f32 0.0, %v1000
        %v1458 = vsub.f32 0.0, %v1002
        %v1459 = vsub.f32 0.0, %v1006
        %v1460 = vsub.f32 0.0, %v1008
        %v1461 = vsub.f32 0.0, %v1010
        %v1462 = vsub.f32 0.0, %v1012
        %v1463 = vmul.f32 %v1399, 1.442695
        %v1464 = vpow.pop %v1463
        %v1465 = vmul.f32 %v1400, 1.442695
        %v1466 = vpow.pop %v1465
        %v1467 = vmul.f32 %v1401, 1.442695
        %v1468 = vpow.pop %v1467
        %v1469 = vmul.f32 %v1402, 1.442695
        %v1470 = vpow.pop %v1469
        %v1471 = vmul.f32 %v1403, 1.442695
        %v1472 = vpow.pop %v1471
        %v1473 = vmul.f32 %v1404, 1.442695
        %v1474 = vpow.pop %v1473
        %v1475 = vmul.f32 %v1405, 1.442695
        %v1476 = vpow.pop %v1475
        %v1477 = vmul.f32 %v1406, 1.442695
        %v1478 = vpow.pop %v1477
        %v1479 = vmul.f32 %v1407, 1.442695
        %v1480 = vpow.pop %v1479
        %v1481 = vmul.f32 %v1408, 1.442695
        %v1482 = vpow.pop %v1481
        %v1483 = vmul.f32 %v1409, 1.442695
        %v1484 = vpow.pop %v1483
        %v1485 = vmul.f32 %v1410, 1.442695
        %v1486 = vpow.pop %v1485
        %v1487 = vmul.f32 %v1411, 1.442695
        %v1488 = vpow.pop %v1487
        %v1489 = vmul.f32 %v1412, 1.442695
        %v1490 = vpow.pop %v1489
        %v1491 = vmul.f32 %v1413, 1.442695
        %v1492 = vpow.pop %v1491
        %v1493 = vmul.f32 %v1414, 1.442695
        %v1494 = vpow.pop %v1493
        %v1495 = vmul.f32 %v1415, 1.442695
        %v1496 = vpow.pop %v1495
        %v1497 = vmul.f32 %v1416, 1.442695
        %v1498 = vpow.pop %v1497
        %v1499 = vmul.f32 %v1417, 1.442695
        %v1500 = vpow.pop %v1499
        %v1501 = vmul.f32 %v1418, 1.442695
        %v1502 = vpow.pop %v1501
        %v1503 = vmul.f32 %v1419, 1.442695
        %v1504 = vpow.pop %v1503
        %v1505 = vmul.f32 %v1420, 1.442695
        %v1506 = vpow.pop %v1505
        %v1507 = vmul.f32 %v1421, 1.442695
        %v1508 = vpow.pop %v1507
        %v1509 = vmul.f32 %v1422, 1.442695
        %v1510 = vpow.pop %v1509
        %v1511 = vmul.f32 %v1423, 1.442695
        %v1512 = vpow.pop %v1511
        %v1513 = vmul.f32 %v1424, 1.442695
        %v1514 = vpow.pop %v1513
        %v1515 = vmul.f32 %v1425, 1.442695
        %v1516 = vpow.pop %v1515
        %v1517 = vmul.f32 %v1426, 1.442695
        %v1518 = vpow.pop %v1517
        %v1519 = vmul.f32 %v1427, 1.442695
        %v1520 = vpow.pop %v1519
        %v1521 = vmul.f32 %v1428, 1.442695
        %v1522 = vpow.pop %v1521
        %v1523 = vmul.f32 %v1429, 1.442695
        %v1524 = vpow.pop %v1523
        %v1525 = vmul.f32 %v1430, 1.442695
        %v1526 = vpow.pop %v1525
        %v1527 = vmul.f32 %v1431, 1.442695
        %v1528 = vpow.pop %v1527
        %v1529 = vmul.f32 %v1432, 1.442695
        %v1530 = vpow.pop %v1529
        %v1531 = vmul.f32 %v1433, 1.442695
        %v1532 = vpow.pop %v1531
        %v1533 = vmul.f32 %v1434, 1.442695
        %v1534 = vpow.pop %v1533
        %v1535 = vmul.f32 %v1435, 1.442695
        %v1536 = vpow.pop %v1535
        %v1537 = vmul.f32 %v1436, 1.442695
        %v1538 = vpow.pop %v1537
        %v1539 = vmul.f32 %v1437, 1.442695
        %v1540 = vpow.pop %v1539
        %v1541 = vmul.f32 %v1438, 1.442695
        %v1542 = vpow.pop %v1541
        %v1543 = vmul.f32 %v1439, 1.442695
        %v1544 = vpow.pop %v1543
        %v1545 = vmul.f32 %v1440, 1.442695
        %v1546 = vpow.pop %v1545
        %v1547 = vmul.f32 %v1441, 1.442695
        %v1548 = vpow.pop %v1547
        %v1549 = vmul.f32 %v1442, 1.442695
        %v1550 = vpow.pop %v1549
        %v1551 = vmul.f32 %v1443, 1.442695
        %v1552 = vpow.pop %v1551
        %v1553 = vmul.f32 %v1444, 1.442695
        %v1554 = vpow.pop %v1553
        %v1555 = vmul.f32 %v1445, 1.442695
        %v1556 = vpow.pop %v1555
        %v1557 = vmul.f32 %v1446, 1.442695
        %v1558 = vpow.pop %v1557
        %v1559 = vmul.f32 %v1447, 1.442695
        %v1560 = vpow.pop %v1559
        %v1561 = vmul.f32 %v1448, 1.442695
        %v1562 = vpow.pop %v1561
        %v1563 = vmul.f32 %v1449, 1.442695
        %v1564 = vpow.pop %v1563
        %v1565 = vmul.f32 %v1450, 1.442695
        %v1566 = vpow.pop %v1565
        %v1567 = vmul.f32 %v1451, 1.442695
        %v1568 = vpow.pop %v1567
        %v1569 = vmul.f32 %v1452, 1.442695
        %v1570 = vpow.pop %v1569
        %v1571 = vmul.f32 %v1453, 1.442695
        %v1572 = vpow.pop %v1571
        %v1573 = vmul.f32 %v1454, 1.442695
        %v1574 = vpow.pop %v1573
        %v1575 = vmul.f32 %v1455, 1.442695
        %v1576 = vpow.pop %v1575
        %v1577 = vmul.f32 %v1456, 1.442695
        %v1578 = vpow.pop %v1577
        %v1579 = vmul.f32 %v1457, 1.442695
        %v1580 = vpow.pop %v1579
        %v1581 = vmul.f32 %v1458, 1.442695
        %v1582 = vpow.pop %v1581
        %v1583 = vmul.f32 %v1459, 1.442695
        %v1584 = vpow.pop %v1583
        %v1585 = vmul.f32 %v1460, 1.442695
        %v1586 = vpow.pop %v1585
        %v1587 = vmul.f32 %v1461, 1.442695
        %v1588 = vpow.pop %v1587
        %v1589 = vmul.f32 %v1462, 1.442695
        %v1590 = vpow.pop %v1589
        %v1591 = vadd.f32 %v1464, 1.0
        %v1592 = vadd.f32 %v1466, 1.0
        %v1593 = vadd.f32 %v1468, 1.0
        %v1594 = vadd.f32 %v1470, 1.0
        %v1595 = vadd.f32 %v1472, 1.0
        %v1596 = vadd.f32 %v1474, 1.0
        %v1597 = vadd.f32 %v1476, 1.0
        %v1598 = vadd.f32 %v1478, 1.0
        %v1599 = vadd.f32 %v1480, 1.0
        %v1600 = vadd.f32 %v1482, 1.0
        %v1601 = vadd.f32 %v1484, 1.0
        %v1602 = vadd.f32 %v1486, 1.0
        %v1603 = vadd.f32 %v1488, 1.0
        %v1604 = vadd.f32 %v1490, 1.0
        %v1605 = vadd.f32 %v1492, 1.0
        %v1606 = vadd.f32 %v1494, 1.0
        %v1607 = vadd.f32 %v1496, 1.0
        %v1608 = vadd.f32 %v1498, 1.0
        %v1609 = vadd.f32 %v1500, 1.0
        %v1610 = vadd.f32 %v1502, 1.0
        %v1611 = vadd.f32 %v1504, 1.0
        %v1612 = vadd.f32 %v1506, 1.0
        %v1613 = vadd.f32 %v1508, 1.0
        %v1614 = vadd.f32 %v1510, 1.0
        %v1615 = vadd.f32 %v1512, 1.0
        %v1616 = vadd.f32 %v1514, 1.0
        %v1617 = vadd.f32 %v1516, 1.0
        %v1618 = vadd.f32 %v1518, 1.0
        %v1619 = vadd.f32 %v1520, 1.0
        %v1620 = vadd.f32 %v1522, 1.0
        %v1621 = vadd.f32 %v1524, 1.0
        %v1622 = vadd.f32 %v1526, 1.0
        %v1623 = vadd.f32 %v1528, 1.0
        %v1624 = vadd.f32 %v1530, 1.0
        %v1625 = vadd.f32 %v1532, 1.0
        %v1626 = vadd.f32 %v1534, 1.0
        %v1627 = vadd.f32 %v1536, 1.0
        %v1628 = vadd.f32 %v1538, 1.0
        %v1629 = vadd.f32 %v1540, 1.0
        %v1630 = vadd.f32 %v1542, 1.0
        %v1631 = vadd.f32 %v1544, 1.0
        %v1632 = vadd.f32 %v1546, 1.0
        %v1633 = vadd.f32 %v1548, 1.0
        %v1634 = vadd.f32 %v1550, 1.0
        %v1635 = vadd.f32 %v1552, 1.0
        %v1636 = vadd.f32 %v1554, 1.0
        %v1637 = vadd.f32 %v1556, 1.0
        %v1638 = vadd.f32 %v1558, 1.0
        %v1639 = vadd.f32 %v1560, 1.0
        %v1640 = vadd.f32 %v1562, 1.0
        %v1641 = vadd.f32 %v1564, 1.0
        %v1642 = vadd.f32 %v1566, 1.0
        %v1643 = vadd.f32 %v1568, 1.0
        %v1644 = vadd.f32 %v1570, 1.0
        %v1645 = vadd.f32 %v1572, 1.0
        %v1646 = vadd.f32 %v1574, 1.0
        %v1647 = vadd.f32 %v1576, 1.0
        %v1648 = vadd.f32 %v1578, 1.0
        %v1649 = vadd.f32 %v1580, 1.0
        %v1650 = vadd.f32 %v1582, 1.0
        %v1651 = vadd.f32 %v1584, 1.0
        %v1652 = vadd.f32 %v1586, 1.0
        %v1653 = vadd.f32 %v1588, 1.0
        %v1654 = vadd.f32 %v1590, 1.0
        %v1655 = vrcp.pop %v1591
        %v1656 = vrcp.pop %v1592
        %v1657 = vrcp.pop %v1593
        %v1658 = vrcp.pop %v1594
        %v1659 = vrcp.pop %v1595
        %v1660 = vrcp.pop %v1596
        %v1661 = vrcp.pop %v1597
        %v1662 = vrcp.pop %v1598
        %v1663 = vrcp.pop %v1599
        %v1664 = vrcp.pop %v1600
        %v1665 = vrcp.pop %v1601
        %v1666 = vrcp.pop %v1602
        %v1667 = vrcp.pop %v1603
        %v1668 = vrcp.pop %v1604
        %v1669 = vrcp.pop %v1605
        %v1670 = vrcp.pop %v1606
        %v1671 = vrcp.pop %v1607
        %v1672 = vrcp.pop %v1608
        %v1673 = vrcp.pop %v1609
        %v1674 = vrcp.pop %v1610
        %v1675 = vrcp.pop %v1611
        %v1676 = vrcp.pop %v1612
        %v1677 = vrcp.pop %v1613
        %v1678 = vrcp.pop %v1614
        %v1679 = vrcp.pop %v1615
        %v1680 = vrcp.pop %v1616
        %v1681 = vrcp.pop %v1617
        %v1682 = vrcp.pop %v1618
        %v1683 = vrcp.pop %v1619
        %v1684 = vrcp.pop %v1620
        %v1685 = vrcp.pop %v1621
        %v1686 = vrcp.pop %v1622
        %v1687 = vrcp.pop %v1623
        %v1688 = vrcp.pop %v1624
        %v1689 = vrcp.pop %v1625
        %v1690 = vrcp.pop %v1626
        %v1691 = vrcp.pop %v1627
        %v1692 = vrcp.pop %v1628
        %v1693 = vrcp.pop %v1629
        %v1694 = vrcp.pop %v1630
        %v1695 = vrcp.pop %v1631
        %v1696 = vrcp.pop %v1632
        %v1697 = vrcp.pop %v1633
        %v1698 = vrcp.pop %v1634
        %v1699 = vrcp.pop %v1635
        %v1700 = vrcp.pop %v1636
        %v1701 = vrcp.pop %v1637
        %v1702 = vrcp.pop %v1638
        %v1703 = vrcp.pop %v1639
        %v1704 = vrcp.pop %v1640
        %v1705 = vrcp.pop %v1641
        %v1706 = vrcp.pop %v1642
        %v1707 = vrcp.pop %v1643
        %v1708 = vrcp.pop %v1644
        %v1709 = vrcp.pop %v1645
        %v1710 = vrcp.pop %v1646
        %v1711 = vrcp.pop %v1647
        %v1712 = vrcp.pop %v1648
        %v1713 = vrcp.pop %v1649
        %v1714 = vrcp.pop %v1650
        %v1715 = vrcp.pop %v1651
        %v1716 = vrcp.pop %v1652
        %v1717 = vrcp.pop %v1653
        %v1718 = vrcp.pop %v1654
        %v1719 = vmul.f32 %v856, %v1655
        %v1720 = vmul.f32 %v858, %v1656
        %v1721 = vmul.f32 %v860, %v1657
        %v1722 = vmul.f32 %v862, %v1658
        %v1723 = vmul.f32 %v866, %v1659
        %v1724 = vmul.f32 %v868, %v1660
        %v1725 = vmul.f32 %v870, %v1661
        %v1726 = vmul.f32 %v872, %v1662
        %v1727 = vmul.f32 %v876, %v1663
        %v1728 = vmul.f32 %v878, %v1664
        %v1729 = vmul.f32 %v880, %v1665
        %v1730 = vmul.f32 %v882, %v1666
        %v1731 = vmul.f32 %v886, %v1667
        %v1732 = vmul.f32 %v888, %v1668
        %v1733 = vmul.f32 %v890, %v1669
        %v1734 = vmul.f32 %v892, %v1670
        %v1735 = vmul.f32 %v896, %v1671
        %v1736 = vmul.f32 %v898, %v1672
        %v1737 = vmul.f32 %v900, %v1673
        %v1738 = vmul.f32 %v902, %v1674
        %v1739 = vmul.f32 %v906, %v1675
        %v1740 = vmul.f32 %v908, %v1676
        %v1741 = vmul.f32 %v910, %v1677
        %v1742 = vmul.f32 %v912, %v1678
        %v1743 = vmul.f32 %v916, %v1679
        %v1744 = vmul.f32 %v918, %v1680
        %v1745 = vmul.f32 %v920, %v1681
        %v1746 = vmul.f32 %v922, %v1682
        %v1747 = vmul.f32 %v926, %v1683
        %v1748 = vmul.f32 %v928, %v1684
        %v1749 = vmul.f32 %v930, %v1685
        %v1750 = vmul.f32 %v932, %v1686
        %v1751 = vmul.f32 %v936, %v1687
        %v1752 = vmul.f32 %v938, %v1688
        %v1753 = vmul.f32 %v940, %v1689
        %v1754 = vmul.f32 %v942, %v1690
        %v1755 = vmul.f32 %v946, %v1691
        %v1756 = vmul.f32 %v948, %v1692
        %v1757 = vmul.f32 %v950, %v1693
        %v1758 = vmul.f32 %v952, %v1694
        %v1759 = vmul.f32 %v956, %v1695
        %v1760 = vmul.f32 %v958, %v1696
        %v1761 = vmul.f32 %v960, %v1697
        %v1762 = vmul.f32 %v962, %v1698
        %v1763 = vmul.f32 %v966, %v1699
        %v1764 = vmul.f32 %v968, %v1700
        %v1765 = vmul.f32 %v970, %v1701
        %v1766 = vmul.f32 %v972, %v1702
        %v1767 = vmul.f32 %v976, %v1703
        %v1768 = vmul.f32 %v978, %v1704
        %v1769 = vmul.f32 %v980, %v1705
        %v1770 = vmul.f32 %v982, %v1706
        %v1771 = vmul.f32 %v986, %v1707
        %v1772 = vmul.f32 %v988, %v1708
        %v1773 = vmul.f32 %v990, %v1709
        %v1774 = vmul.f32 %v992, %v1710
        %v1775 = vmul.f32 %v996, %v1711
        %v1776 = vmul.f32 %v998, %v1712
        %v1777 = vmul.f32 %v1000, %v1713
        %v1778 = vmul.f32 %v1002, %v1714
        %v1779 = vmul.f32 %v1006, %v1715
        %v1780 = vmul.f32 %v1008, %v1716
        %v1781 = vmul.f32 %v1010, %v1717
        %v1782 = vmul.f32 %v1012, %v1718
        %v1783 = vmul.f32 %v1719, %v1241
        %v1784 = vmul.f32 %v1720, %v1243
        %v1785 = vmul.f32 %v1721, %v1245
        %v1786 = vmul.f32 %v1722, %v1247
        %v1787 = vmul.f32 %v1723, %v1251
        %v1788 = vmul.f32 %v1724, %v1253
        %v1789 = vmul.f32 %v1725, %v1255
        %v1790 = vmul.f32 %v1726, %v1257
        %v1791 = vmul.f32 %v1727, %v1261
        %v1792 = vmul.f32 %v1728, %v1263
        %v1793 = vmul.f32 %v1729, %v1265
        %v1794 = vmul.f32 %v1730, %v1267
        %v1795 = vmul.f32 %v1731, %v1271
        %v1796 = vmul.f32 %v1732, %v1273
        %v1797 = vmul.f32 %v1733, %v1275
        %v1798 = vmul.f32 %v1734, %v1277
        %v1799 = vmul.f32 %v1735, %v1281
        %v1800 = vmul.f32 %v1736, %v1283
        %v1801 = vmul.f32 %v1737, %v1285
        %v1802 = vmul.f32 %v1738, %v1287
        %v1803 = vmul.f32 %v1739, %v1291
        %v1804 = vmul.f32 %v1740, %v1293
        %v1805 = vmul.f32 %v1741, %v1295
        %v1806 = vmul.f32 %v1742, %v1297
        %v1807 = vmul.f32 %v1743, %v1301
        %v1808 = vmul.f32 %v1744, %v1303
        %v1809 = vmul.f32 %v1745, %v1305
        %v1810 = vmul.f32 %v1746, %v1307
        %v1811 = vmul.f32 %v1747, %v1311
        %v1812 = vmul.f32 %v1748, %v1313
        %v1813 = vmul.f32 %v1749, %v1315
        %v1814 = vmul.f32 %v1750, %v1317
        %v1815 = vmul.f32 %v1751, %v1321
        %v1816 = vmul.f32 %v1752, %v1323
        %v1817 = vmul.f32 %v1753, %v1325
        %v1818 = vmul.f32 %v1754, %v1327
        %v1819 = vmul.f32 %v1755, %v1331
        %v1820 = vmul.f32 %v1756, %v1333
        %v1821 = vmul.f32 %v1757, %v1335
        %v1822 = vmul.f32 %v1758, %v1337
        %v1823 = vmul.f32 %v1759, %v1341
        %v1824 = vmul.f32 %v1760, %v1343
        %v1825 = vmul.f32 %v1761, %v1345
        %v1826 = vmul.f32 %v1762, %v1347
        %v1827 = vmul.f32 %v1763, %v1351
        %v1828 = vmul.f32 %v1764, %v1353
        %v1829 = vmul.f32 %v1765, %v1355
        %v1830 = vmul.f32 %v1766, %v1357
        %v1831 = vmul.f32 %v1767, %v1361
        %v1832 = vmul.f32 %v1768, %v1363
        %v1833 = vmul.f32 %v1769, %v1365
        %v1834 = vmul.f32 %v1770, %v1367
        %v1835 = vmul.f32 %v1771, %v1371
        %v1836 = vmul.f32 %v1772, %v1373
        %v1837 = vmul.f32 %v1773, %v1375
        %v1838 = vmul.f32 %v1774, %v1377
        %v1839 = vmul.f32 %v1775, %v1381
        %v1840 = vmul.f32 %v1776, %v1383
        %v1841 = vmul.f32 %v1777, %v1385
        %v1842 = vmul.f32 %v1778, %v1387
        %v1843 = vmul.f32 %v1779, %v1391
        %v1844 = vmul.f32 %v1780, %v1393
        %v1845 = vmul.f32 %v1781, %v1395
        %v1846 = vmul.f32 %v1782, %v1397
        %v1847 = vld [vmem:[#allocation2] sm:$0xff]
        %v1848 = vld [vmem:[#allocation2 + $0x8] sm:$0xff]
        %v1849 = vld [vmem:[#allocation2 + $0x10] sm:$0xff]
        %v1850 = vld [vmem:[#allocation2 + $0x18] sm:$0xff]
        %v1851 = vld [vmem:[#allocation2 + $0x20] sm:$0xff]
        %v1852 = vld [vmem:[#allocation2 + $0x28] sm:$0xff]
        %v1853 = vld [vmem:[#allocation2 + $0x30] sm:$0xff]
        %v1854 = vld [vmem:[#allocation2 + $0x38] sm:$0xff]
        %v1855 = vld [vmem:[#allocation2 + $0x40] sm:$0xff]
        %v1856 = vld [vmem:[#allocation2 + $0x48] sm:$0xff]
        %v1857 = vld [vmem:[#allocation2 + $0x50] sm:$0xff]
        %v1858 = vld [vmem:[#allocation2 + $0x58] sm:$0xff]
        %v1859 = vld [vmem:[#allocation2 + $0x60] sm:$0xff]
        %v1860 = vld [vmem:[#allocation2 + $0x68] sm:$0xff]
        %v1861 = vld [vmem:[#allocation2 + $0x70] sm:$0xff]
        %v1862 = vld [vmem:[#allocation2 + $0x78] sm:$0xff]
        %v1863 = vld [vmem:[#allocation2 + $0x80] sm:$0xff]
        %v1864 = vld [vmem:[#allocation2 + $0x88] sm:$0xff]
        %v1865 = vld [vmem:[#allocation2 + $0x90] sm:$0xff]
        %v1866 = vld [vmem:[#allocation2 + $0x98] sm:$0xff]
        %v1867 = vld [vmem:[#allocation2 + $0xa0] sm:$0xff]
        %v1868 = vld [vmem:[#allocation2 + $0xa8] sm:$0xff]
        %v1869 = vld [vmem:[#allocation2 + $0xb0] sm:$0xff]
        %v1870 = vld [vmem:[#allocation2 + $0xb8] sm:$0xff]
        %v1871 = vld [vmem:[#allocation2 + $0xc0] sm:$0xff]
        %v1872 = vld [vmem:[#allocation2 + $0xc8] sm:$0xff]
        %v1873 = vld [vmem:[#allocation2 + $0xd0] sm:$0xff]
        %v1874 = vld [vmem:[#allocation2 + $0xd8] sm:$0xff]
        %v1875 = vld [vmem:[#allocation2 + $0xe0] sm:$0xff]
        %v1876 = vld [vmem:[#allocation2 + $0xe8] sm:$0xff]
        %v1877 = vld [vmem:[#allocation2 + $0xf0] sm:$0xff]
        %v1878 = vld [vmem:[#allocation2 + $0xf8] sm:$0xff]
        %v1879 = vld [vmem:[#allocation2 + $0x100] sm:$0xff]
        %v1880 = vld [vmem:[#allocation2 + $0x108] sm:$0xff]
        %v1881 = vld [vmem:[#allocation2 + $0x110] sm:$0xff]
        %v1882 = vld [vmem:[#allocation2 + $0x118] sm:$0xff]
        %v1883 = vld [vmem:[#allocation2 + $0x120] sm:$0xff]
        %v1884 = vld [vmem:[#allocation2 + $0x128] sm:$0xff]
        %v1885 = vld [vmem:[#allocation2 + $0x130] sm:$0xff]
        %v1886 = vld [vmem:[#allocation2 + $0x138] sm:$0xff]
        %v1887 = vld [vmem:[#allocation2 + $0x140] sm:$0xff]
        %v1888 = vld [vmem:[#allocation2 + $0x148] sm:$0xff]
        %v1889 = vld [vmem:[#allocation2 + $0x150] sm:$0xff]
        %v1890 = vld [vmem:[#allocation2 + $0x158] sm:$0xff]
        %v1891 = vld [vmem:[#allocation2 + $0x160] sm:$0xff]
        %v1892 = vld [vmem:[#allocation2 + $0x168] sm:$0xff]
        %v1893 = vld [vmem:[#allocation2 + $0x170] sm:$0xff]
        %v1894 = vld [vmem:[#allocation2 + $0x178] sm:$0xff]
        %v1895 = vld [vmem:[#allocation2 + $0x180] sm:$0xff]
        %v1896 = vld [vmem:[#allocation2 + $0x188] sm:$0xff]
        %v1897 = vld [vmem:[#allocation2 + $0x190] sm:$0xff]
        %v1898 = vld [vmem:[#allocation2 + $0x198] sm:$0xff]
        %v1899 = vld [vmem:[#allocation2 + $0x1a0] sm:$0xff]
        %v1900 = vld [vmem:[#allocation2 + $0x1a8] sm:$0xff]
        %v1901 = vld [vmem:[#allocation2 + $0x1b0] sm:$0xff]
        %v1902 = vld [vmem:[#allocation2 + $0x1b8] sm:$0xff]
        %v1903 = vld [vmem:[#allocation2 + $0x1c0] sm:$0xff]
        %v1904 = vld [vmem:[#allocation2 + $0x1c8] sm:$0xff]
        %v1905 = vld [vmem:[#allocation2 + $0x1d0] sm:$0xff]
        %v1906 = vld [vmem:[#allocation2 + $0x1d8] sm:$0xff]
        %v1907 = vld [vmem:[#allocation2 + $0x1e0] sm:$0xff]
        %v1908 = vld [vmem:[#allocation2 + $0x1e8] sm:$0xff]
        %v1909 = vld [vmem:[#allocation2 + $0x1f0] sm:$0xff]
        %v1910 = vld [vmem:[#allocation2 + $0x1f8] sm:$0xff]
        %v1911 = vpack.c.bf16 %v1785, %v1783
        %v1912 = vpack.c.bf16 %v1786, %v1784
        %v1913 = vpack.c.bf16 %v1789, %v1787
        %v1914 = vpack.c.bf16 %v1790, %v1788
        %v1915 = vpack.c.bf16 %v1793, %v1791
        %v1916 = vpack.c.bf16 %v1794, %v1792
        %v1917 = vpack.c.bf16 %v1797, %v1795
        %v1918 = vpack.c.bf16 %v1798, %v1796
        %v1919 = vpack.c.bf16 %v1801, %v1799
        %v1920 = vpack.c.bf16 %v1802, %v1800
        %v1921 = vpack.c.bf16 %v1805, %v1803
        %v1922 = vpack.c.bf16 %v1806, %v1804
        %v1923 = vpack.c.bf16 %v1809, %v1807
        %v1924 = vpack.c.bf16 %v1810, %v1808
        %v1925 = vpack.c.bf16 %v1813, %v1811
        %v1926 = vpack.c.bf16 %v1814, %v1812
        %v1927 = vpack.c.bf16 %v1817, %v1815
        %v1928 = vpack.c.bf16 %v1818, %v1816
        %v1929 = vpack.c.bf16 %v1821, %v1819
        %v1930 = vpack.c.bf16 %v1822, %v1820
        %v1931 = vpack.c.bf16 %v1825, %v1823
        %v1932 = vpack.c.bf16 %v1826, %v1824
        %v1933 = vpack.c.bf16 %v1829, %v1827
        %v1934 = vpack.c.bf16 %v1830, %v1828
        %v1935 = vpack.c.bf16 %v1833, %v1831
        %v1936 = vpack.c.bf16 %v1834, %v1832
        %v1937 = vpack.c.bf16 %v1837, %v1835
        %v1938 = vpack.c.bf16 %v1838, %v1836
        %v1939 = vpack.c.bf16 %v1841, %v1839
        %v1940 = vpack.c.bf16 %v1842, %v1840
        %v1941 = vpack.c.bf16 %v1845, %v1843
        %v1942 = vpack.c.bf16 %v1846, %v1844
        %v1943 = vld [vmem:[%s314] sm:$0xff]
        %v1944 = vld [vmem:[%s314 + $0x8] sm:$0xff]
        %v1945 = vld [vmem:[%s314 + $0x10] sm:$0xff]
        %v1946 = vld [vmem:[%s314 + $0x18] sm:$0xff]
        %v1947 = vld [vmem:[%s314 + $0x20] sm:$0xff]
        %v1948 = vld [vmem:[%s314 + $0x28] sm:$0xff]
        %v1949 = vld [vmem:[%s314 + $0x30] sm:$0xff]
        %v1950 = vld [vmem:[%s314 + $0x38] sm:$0xff]
        %v1951 = vld [vmem:[%s314 + $0x40] sm:$0xff]
        %v1952 = vld [vmem:[%s314 + $0x48] sm:$0xff]
        %v1953 = vld [vmem:[%s314 + $0x50] sm:$0xff]
        %v1954 = vld [vmem:[%s314 + $0x58] sm:$0xff]
        %v1955 = vld [vmem:[%s314 + $0x60] sm:$0xff]
        %v1956 = vld [vmem:[%s314 + $0x68] sm:$0xff]
        %v1957 = vld [vmem:[%s314 + $0x70] sm:$0xff]
        %v1958 = vld [vmem:[%s314 + $0x78] sm:$0xff]
        %v1959 = vld [vmem:[%s314 + $0x80] sm:$0xff]
        %v1960 = vld [vmem:[%s314 + $0x88] sm:$0xff]
        %v1961 = vld [vmem:[%s314 + $0x90] sm:$0xff]
        %v1962 = vld [vmem:[%s314 + $0x98] sm:$0xff]
        %v1963 = vld [vmem:[%s314 + $0xa0] sm:$0xff]
        %v1964 = vld [vmem:[%s314 + $0xa8] sm:$0xff]
        %v1965 = vld [vmem:[%s314 + $0xb0] sm:$0xff]
        %v1966 = vld [vmem:[%s314 + $0xb8] sm:$0xff]
        %v1967 = vld [vmem:[%s314 + $0xc0] sm:$0xff]
        %v1968 = vld [vmem:[%s314 + $0xc8] sm:$0xff]
        %v1969 = vld [vmem:[%s314 + $0xd0] sm:$0xff]
        %v1970 = vld [vmem:[%s314 + $0xd8] sm:$0xff]
        %v1971 = vld [vmem:[%s314 + $0xe0] sm:$0xff]
        %v1972 = vld [vmem:[%s314 + $0xe8] sm:$0xff]
        %v1973 = vld [vmem:[%s314 + $0xf0] sm:$0xff]
        %v1974 = vld [vmem:[%s314 + $0xf8] sm:$0xff]
        %v2007 = vunpack.c.l.b16 %v1943
        %v2008 = vunpack.c.h.b16 %v1943
        %v2009 = vunpack.c.l.b16 %v1944
        %v2010 = vunpack.c.h.b16 %v1944
        %v2011 = vunpack.c.l.b16 %v1945
        %v2012 = vunpack.c.h.b16 %v1945
        %v2013 = vunpack.c.l.b16 %v1946
        %v2014 = vunpack.c.h.b16 %v1946
        %v2015 = vunpack.c.l.b16 %v1947
        %v2016 = vunpack.c.h.b16 %v1947
        %v2017 = vunpack.c.l.b16 %v1948
        %v2018 = vunpack.c.h.b16 %v1948
        %v2019 = vunpack.c.l.b16 %v1949
        %v2020 = vunpack.c.h.b16 %v1949
        %v2021 = vunpack.c.l.b16 %v1950
        %v2022 = vunpack.c.h.b16 %v1950
        %v2023 = vunpack.c.l.b16 %v1951
        %v2024 = vunpack.c.h.b16 %v1951
        %v2025 = vunpack.c.l.b16 %v1952
        %v2026 = vunpack.c.h.b16 %v1952
        %v2027 = vunpack.c.l.b16 %v1953
        %v2028 = vunpack.c.h.b16 %v1953
        %v2029 = vunpack.c.l.b16 %v1954
        %v2030 = vunpack.c.h.b16 %v1954
        %v2031 = vunpack.c.l.b16 %v1955
        %v2032 = vunpack.c.h.b16 %v1955
        %v2033 = vunpack.c.l.b16 %v1956
        %v2034 = vunpack.c.h.b16 %v1956
        %v2035 = vunpack.c.l.b16 %v1957
        %v2036 = vunpack.c.h.b16 %v1957
        %v2037 = vunpack.c.l.b16 %v1958
        %v2038 = vunpack.c.h.b16 %v1958
        %v2039 = vunpack.c.l.b16 %v1959
        %v2040 = vunpack.c.h.b16 %v1959
        %v2041 = vunpack.c.l.b16 %v1960
        %v2042 = vunpack.c.h.b16 %v1960
        %v2043 = vunpack.c.l.b16 %v1961
        %v2044 = vunpack.c.h.b16 %v1961
        %v2045 = vunpack.c.l.b16 %v1962
        %v2046 = vunpack.c.h.b16 %v1962
        %v2047 = vunpack.c.l.b16 %v1963
        %v2048 = vunpack.c.h.b16 %v1963
        %v2049 = vunpack.c.l.b16 %v1964
        %v2050 = vunpack.c.h.b16 %v1964
        %v2051 = vunpack.c.l.b16 %v1965
        %v2052 = vunpack.c.h.b16 %v1965
        %v2053 = vunpack.c.l.b16 %v1966
        %v2054 = vunpack.c.h.b16 %v1966
        %v2055 = vunpack.c.l.b16 %v1967
        %v2056 = vunpack.c.h.b16 %v1967
        %v2057 = vunpack.c.l.b16 %v1968
        %v2058 = vunpack.c.h.b16 %v1968
        %v2059 = vunpack.c.l.b16 %v1969
        %v2060 = vunpack.c.h.b16 %v1969
        %v2061 = vunpack.c.l.b16 %v1970
        %v2062 = vunpack.c.h.b16 %v1970
        %v2063 = vunpack.c.l.b16 %v1971
        %v2064 = vunpack.c.h.b16 %v1971
        %v2065 = vunpack.c.l.b16 %v1972
        %v2066 = vunpack.c.h.b16 %v1972
        %v2067 = vunpack.c.l.b16 %v1973
        %v2068 = vunpack.c.h.b16 %v1973
        %v2069 = vunpack.c.l.b16 %v1974
        %v2070 = vunpack.c.h.b16 %v1974
        %v2071 = vpack.c.b16 %v2009, %v2007
        %v2072 = vpack.c.b16 %v2010, %v2008
        %v2073 = vpack.c.b16 %v2013, %v2011
        %v2074 = vpack.c.b16 %v2014, %v2012
        %v2075 = vpack.c.b16 %v2017, %v2015
        %v2076 = vpack.c.b16 %v2018, %v2016
        %v2077 = vpack.c.b16 %v2021, %v2019
        %v2078 = vpack.c.b16 %v2022, %v2020
        %v2079 = vpack.c.b16 %v2025, %v2023
        %v2080 = vpack.c.b16 %v2026, %v2024
        %v2081 = vpack.c.b16 %v2029, %v2027
        %v2082 = vpack.c.b16 %v2030, %v2028
        %v2083 = vpack.c.b16 %v2033, %v2031
        %v2084 = vpack.c.b16 %v2034, %v2032
        %v2085 = vpack.c.b16 %v2037, %v2035
        %v2086 = vpack.c.b16 %v2038, %v2036
        %v2087 = vpack.c.b16 %v2041, %v2039
        %v2088 = vpack.c.b16 %v2042, %v2040
        %v2089 = vpack.c.b16 %v2045, %v2043
        %v2090 = vpack.c.b16 %v2046, %v2044
        %v2091 = vpack.c.b16 %v2049, %v2047
        %v2092 = vpack.c.b16 %v2050, %v2048
        %v2093 = vpack.c.b16 %v2053, %v2051
        %v2094 = vpack.c.b16 %v2054, %v2052
        %v2095 = vpack.c.b16 %v2057, %v2055
        %v2096 = vpack.c.b16 %v2058, %v2056
        %v2097 = vpack.c.b16 %v2061, %v2059
        %v2098 = vpack.c.b16 %v2062, %v2060
        %v2099 = vpack.c.b16 %v2065, %v2063
        %v2100 = vpack.c.b16 %v2066, %v2064
        %v2101 = vpack.c.b16 %v2069, %v2067
        %v2102 = vpack.c.b16 %v2070, %v2068
        %2135 = vmatprep.subr.bf16.mxu0 %v2072
        %2136 = vmatpush1.bf16.msra.mxu0 %v2071
        %2137 = vmatprep.subr.bf16.mxu0 %v2074
        %2138 = vmatpush1.bf16.msra.mxu0 %v2073
        %2139 = vmatprep.subr.bf16.mxu0 %v2076
        %2140 = vmatpush1.bf16.msra.mxu0 %v2075
        %2141 = vmatprep.subr.bf16.mxu0 %v2078
        %2142 = vmatpush1.bf16.msra.mxu0 %v2077
        %2143 = vmatprep.subr.bf16.mxu0 %v2080
        %2144 = vmatpush1.bf16.msra.mxu0 %v2079
        %2145 = vmatprep.subr.bf16.mxu0 %v2082
        %2146 = vmatpush1.bf16.msra.mxu0 %v2081
        %2147 = vmatprep.subr.bf16.mxu0 %v2084
        %2148 = vmatpush1.bf16.msra.mxu0 %v2083
        %2149 = vmatprep.subr.bf16.mxu0 %v2086
        %2150 = vmatpush1.bf16.msra.mxu0 %v2085
        %2151 = vmatprep.subr.bf16.mxu0 %v2088
        %2152 = vmatpush1.bf16.msra.mxu0 %v2087
        %2153 = vmatprep.subr.bf16.mxu0 %v2090
        %2154 = vmatpush1.bf16.msra.mxu0 %v2089
        %2155 = vmatprep.subr.bf16.mxu0 %v2092
        %2156 = vmatpush1.bf16.msra.mxu0 %v2091
        %2157 = vmatprep.subr.bf16.mxu0 %v2094
        %2158 = vmatpush1.bf16.msra.mxu0 %v2093
        %2159 = vmatprep.subr.bf16.mxu0 %v2096
        %2160 = vmatpush1.bf16.msra.mxu0 %v2095
        %2161 = vmatprep.subr.bf16.mxu0 %v2098
        %2162 = vmatpush1.bf16.msra.mxu0 %v2097
        %2163 = vmatprep.subr.bf16.mxu0 %v2100
        %2164 = vmatpush1.bf16.msra.mxu0 %v2099
        %2165 = vmatprep.subr.bf16.mxu0 %v2102
        %2166 = vmatpush1.bf16.msra.mxu0 %v2101
        %2167 = vmatprep.mubr.bf16.mxu0 %v1912
        %2168 = vmatmul.mubr.bf16.gmra.mrb[0].mxu0 %v1911
        %v2169 = vpop.f32.mrb[0].mxu0
        %v2170 = vadd.f32 0.0, %v2169
        %v2171 = vpop.f32.mrb[0].mxu0
        %v2172 = vadd.f32 0.0, %v2171
        %v2173 = vpop.f32.mrb[0].mxu0
        %v2174 = vadd.f32 0.0, %v2173
        %v2175 = vpop.f32.mrb[0].mxu0
        %v2176 = vadd.f32 0.0, %v2175
        %2177 = vmatprep.mubr.bf16.mxu0 %v1914
        %2178 = vmatmul.mubr.bf16.gmra.mrb[0].mxu0 %v1913
        %v2179 = vpop.f32.mrb[0].mxu0
        %v2180 = vadd.f32 0.0, %v2179
        %v2181 = vpop.f32.mrb[0].mxu0
        %v2182 = vadd.f32 0.0, %v2181
        %v2183 = vpop.f32.mrb[0].mxu0
        %v2184 = vadd.f32 0.0, %v2183
        %v2185 = vpop.f32.mrb[0].mxu0
        %v2186 = vadd.f32 0.0, %v2185
        %2187 = vmatprep.mubr.bf16.mxu0 %v1916
        %2188 = vmatmul.mubr.bf16.gmra.mrb[0].mxu0 %v1915
        %v2189 = vpop.f32.mrb[0].mxu0
        %v2190 = vadd.f32 0.0, %v2189
        %v2191 = vpop.f32.mrb[0].mxu0
        %v2192 = vadd.f32 0.0, %v2191
        %v2193 = vpop.f32.mrb[0].mxu0
        %v2194 = vadd.f32 0.0, %v2193
        %v2195 = vpop.f32.mrb[0].mxu0
        %v2196 = vadd.f32 0.0, %v2195
        %2197 = vmatprep.mubr.bf16.mxu0 %v1918
        %2198 = vmatmul.mubr.bf16.gmra.mrb[0].mxu0 %v1917
        %v2199 = vpop.f32.mrb[0].mxu0
        %v2200 = vadd.f32 0.0, %v2199
        %v2201 = vpop.f32.mrb[0].mxu0
        %v2202 = vadd.f32 0.0, %v2201
        %v2203 = vpop.f32.mrb[0].mxu0
        %v2204 = vadd.f32 0.0, %v2203
        %v2205 = vpop.f32.mrb[0].mxu0
        %v2206 = vadd.f32 0.0, %v2205
        %2207 = vmatprep.mubr.bf16.mxu0 %v1920
        %2208 = vmatmul.mubr.bf16.gmra.mrb[0].mxu0 %v1919
        %v2209 = vpop.f32.mrb[0].mxu0
        %v2210 = vadd.f32 0.0, %v2209
        %v2211 = vpop.f32.mrb[0].mxu0
        %v2212 = vadd.f32 0.0, %v2211
        %v2213 = vpop.f32.mrb[0].mxu0
        %v2214 = vadd.f32 0.0, %v2213
        %v2215 = vpop.f32.mrb[0].mxu0
        %v2216 = vadd.f32 0.0, %v2215
        %2217 = vmatprep.mubr.bf16.mxu0 %v1922
        %2218 = vmatmul.mubr.bf16.gmra.mrb[0].mxu0 %v1921
        %v2219 = vpop.f32.mrb[0].mxu0
        %v2220 = vadd.f32 0.0, %v2219
        %v2221 = vpop.f32.mrb[0].mxu0
        %v2222 = vadd.f32 0.0, %v2221
        %v2223 = vpop.f32.mrb[0].mxu0
        %v2224 = vadd.f32 0.0, %v2223
        %v2225 = vpop.f32.mrb[0].mxu0
        %v2226 = vadd.f32 0.0, %v2225
        %2227 = vmatprep.mubr.bf16.mxu0 %v1924
        %2228 = vmatmul.mubr.bf16.gmra.mrb[0].mxu0 %v1923
        %v2229 = vpop.f32.mrb[0].mxu0
        %v2230 = vadd.f32 0.0, %v2229
        %v2231 = vpop.f32.mrb[0].mxu0
        %v2232 = vadd.f32 0.0, %v2231
        %v2233 = vpop.f32.mrb[0].mxu0
        %v2234 = vadd.f32 0.0, %v2233
        %v2235 = vpop.f32.mrb[0].mxu0
        %v2236 = vadd.f32 0.0, %v2235
        %2237 = vmatprep.mubr.bf16.mxu0 %v1926
        %2238 = vmatmul.mubr.bf16.gmra.mrb[0].mxu0 %v1925
        %v2239 = vpop.f32.mrb[0].mxu0
        %v2240 = vadd.f32 0.0, %v2239
        %v2241 = vpop.f32.mrb[0].mxu0
        %v2242 = vadd.f32 0.0, %v2241
        %v2243 = vpop.f32.mrb[0].mxu0
        %v2244 = vadd.f32 0.0, %v2243
        %v2245 = vpop.f32.mrb[0].mxu0
        %v2246 = vadd.f32 0.0, %v2245
        %2247 = vmatprep.mubr.bf16.mxu0 %v1928
        %2248 = vmatmul.mubr.bf16.gmra.mrb[0].mxu0 %v1927
        %v2249 = vpop.f32.mrb[0].mxu0
        %v2250 = vadd.f32 0.0, %v2249
        %v2251 = vpop.f32.mrb[0].mxu0
        %v2252 = vadd.f32 0.0, %v2251
        %v2253 = vpop.f32.mrb[0].mxu0
        %v2254 = vadd.f32 0.0, %v2253
        %v2255 = vpop.f32.mrb[0].mxu0
        %v2256 = vadd.f32 0.0, %v2255
        %2257 = vmatprep.mubr.bf16.mxu0 %v1930
        %2258 = vmatmul.mubr.bf16.gmra.mrb[0].mxu0 %v1929
        %v2259 = vpop.f32.mrb[0].mxu0
        %v2260 = vadd.f32 0.0, %v2259
        %v2261 = vpop.f32.mrb[0].mxu0
        %v2262 = vadd.f32 0.0, %v2261
        %v2263 = vpop.f32.mrb[0].mxu0
        %v2264 = vadd.f32 0.0, %v2263
        %v2265 = vpop.f32.mrb[0].mxu0
        %v2266 = vadd.f32 0.0, %v2265
        %2267 = vmatprep.mubr.bf16.mxu0 %v1932
        %2268 = vmatmul.mubr.bf16.gmra.mrb[0].mxu0 %v1931
        %v2269 = vpop.f32.mrb[0].mxu0
        %v2270 = vadd.f32 0.0, %v2269
        %v2271 = vpop.f32.mrb[0].mxu0
        %v2272 = vadd.f32 0.0, %v2271
        %v2273 = vpop.f32.mrb[0].mxu0
        %v2274 = vadd.f32 0.0, %v2273
        %v2275 = vpop.f32.mrb[0].mxu0
        %v2276 = vadd.f32 0.0, %v2275
        %2277 = vmatprep.mubr.bf16.mxu0 %v1934
        %2278 = vmatmul.mubr.bf16.gmra.mrb[0].mxu0 %v1933
        %v2279 = vpop.f32.mrb[0].mxu0
        %v2280 = vadd.f32 0.0, %v2279
        %v2281 = vpop.f32.mrb[0].mxu0
        %v2282 = vadd.f32 0.0, %v2281
        %v2283 = vpop.f32.mrb[0].mxu0
        %v2284 = vadd.f32 0.0, %v2283
        %v2285 = vpop.f32.mrb[0].mxu0
        %v2286 = vadd.f32 0.0, %v2285
        %2287 = vmatprep.mubr.bf16.mxu0 %v1936
        %2288 = vmatmul.mubr.bf16.gmra.mrb[0].mxu0 %v1935
        %v2289 = vpop.f32.mrb[0].mxu0
        %v2290 = vadd.f32 0.0, %v2289
        %v2291 = vpop.f32.mrb[0].mxu0
        %v2292 = vadd.f32 0.0, %v2291
        %v2293 = vpop.f32.mrb[0].mxu0
        %v2294 = vadd.f32 0.0, %v2293
        %v2295 = vpop.f32.mrb[0].mxu0
        %v2296 = vadd.f32 0.0, %v2295
        %2297 = vmatprep.mubr.bf16.mxu0 %v1938
        %2298 = vmatmul.mubr.bf16.gmra.mrb[0].mxu0 %v1937
        %v2299 = vpop.f32.mrb[0].mxu0
        %v2300 = vadd.f32 0.0, %v2299
        %v2301 = vpop.f32.mrb[0].mxu0
        %v2302 = vadd.f32 0.0, %v2301
        %v2303 = vpop.f32.mrb[0].mxu0
        %v2304 = vadd.f32 0.0, %v2303
        %v2305 = vpop.f32.mrb[0].mxu0
        %v2306 = vadd.f32 0.0, %v2305
        %2307 = vmatprep.mubr.bf16.mxu0 %v1940
        %2308 = vmatmul.mubr.bf16.gmra.mrb[0].mxu0 %v1939
        %v2309 = vpop.f32.mrb[0].mxu0
        %v2310 = vadd.f32 0.0, %v2309
        %v2311 = vpop.f32.mrb[0].mxu0
        %v2312 = vadd.f32 0.0, %v2311
        %v2313 = vpop.f32.mrb[0].mxu0
        %v2314 = vadd.f32 0.0, %v2313
        %v2315 = vpop.f32.mrb[0].mxu0
        %v2316 = vadd.f32 0.0, %v2315
        %2317 = vmatprep.mubr.bf16.mxu0 %v1942
        %2318 = vmatmul.mubr.bf16.gmra.mrb[0].mxu0 %v1941
        %v2319 = vpop.f32.mrb[0].mxu0
        %v2320 = vadd.f32 0.0, %v2319
        %v2321 = vpop.f32.mrb[0].mxu0
        %v2322 = vadd.f32 0.0, %v2321
        %v2323 = vpop.f32.mrb[0].mxu0
        %v2324 = vadd.f32 0.0, %v2323
        %v2325 = vpop.f32.mrb[0].mxu0
        %v2326 = vadd.f32 0.0, %v2325
        %2327 = vdwg.mxu0
        %v2328 = vadd.f32 %v1847, %v2170
        %v2329 = vadd.f32 %v1848, %v2172
        %v2330 = vadd.f32 %v1849, %v2174
        %v2331 = vadd.f32 %v1850, %v2176
        %v2332 = vadd.f32 %v1851, %v2180
        %v2333 = vadd.f32 %v1852, %v2182
        %v2334 = vadd.f32 %v1853, %v2184
        %v2335 = vadd.f32 %v1854, %v2186
        %v2336 = vadd.f32 %v1855, %v2190
        %v2337 = vadd.f32 %v1856, %v2192
        %v2338 = vadd.f32 %v1857, %v2194
        %v2339 = vadd.f32 %v1858, %v2196
        %v2340 = vadd.f32 %v1859, %v2200
        %v2341 = vadd.f32 %v1860, %v2202
        %v2342 = vadd.f32 %v1861, %v2204
        %v2343 = vadd.f32 %v1862, %v2206
        %v2344 = vadd.f32 %v1863, %v2210
        %v2345 = vadd.f32 %v1864, %v2212
        %v2346 = vadd.f32 %v1865, %v2214
        %v2347 = vadd.f32 %v1866, %v2216
        %v2348 = vadd.f32 %v1867, %v2220
        %v2349 = vadd.f32 %v1868, %v2222
        %v2350 = vadd.f32 %v1869, %v2224
        %v2351 = vadd.f32 %v1870, %v2226
        %v2352 = vadd.f32 %v1871, %v2230
        %v2353 = vadd.f32 %v1872, %v2232
        %v2354 = vadd.f32 %v1873, %v2234
        %v2355 = vadd.f32 %v1874, %v2236
        %v2356 = vadd.f32 %v1875, %v2240
        %v2357 = vadd.f32 %v1876, %v2242
        %v2358 = vadd.f32 %v1877, %v2244
        %v2359 = vadd.f32 %v1878, %v2246
        %v2360 = vadd.f32 %v1879, %v2250
        %v2361 = vadd.f32 %v1880, %v2252
        %v2362 = vadd.f32 %v1881, %v2254
        %v2363 = vadd.f32 %v1882, %v2256
        %v2364 = vadd.f32 %v1883, %v2260
        %v2365 = vadd.f32 %v1884, %v2262
        %v2366 = vadd.f32 %v1885, %v2264
        %v2367 = vadd.f32 %v1886, %v2266
        %v2368 = vadd.f32 %v1887, %v2270
        %v2369 = vadd.f32 %v1888, %v2272
        %v2370 = vadd.f32 %v1889, %v2274
        %v2371 = vadd.f32 %v1890, %v2276
        %v2372 = vadd.f32 %v1891, %v2280
        %v2373 = vadd.f32 %v1892, %v2282
        %v2374 = vadd.f32 %v1893, %v2284
        %v2375 = vadd.f32 %v1894, %v2286
        %v2376 = vadd.f32 %v1895, %v2290
        %v2377 = vadd.f32 %v1896, %v2292
        %v2378 = vadd.f32 %v1897, %v2294
        %v2379 = vadd.f32 %v1898, %v2296
        %v2380 = vadd.f32 %v1899, %v2300
        %v2381 = vadd.f32 %v1900, %v2302
        %v2382 = vadd.f32 %v1901, %v2304
        %v2383 = vadd.f32 %v1902, %v2306
        %v2384 = vadd.f32 %v1903, %v2310
        %v2385 = vadd.f32 %v1904, %v2312
        %v2386 = vadd.f32 %v1905, %v2314
        %v2387 = vadd.f32 %v1906, %v2316
        %v2388 = vadd.f32 %v1907, %v2320
        %v2389 = vadd.f32 %v1908, %v2322
        %v2390 = vadd.f32 %v1909, %v2324
        %v2391 = vadd.f32 %v1910, %v2326
        %2392 = vst [vmem:[#allocation2] sm:$0xff] %v2328
        %2393 = vst [vmem:[#allocation2 + $0x8] sm:$0xff] %v2329
        %2394 = vst [vmem:[#allocation2 + $0x10] sm:$0xff] %v2330
        %2395 = vst [vmem:[#allocation2 + $0x18] sm:$0xff] %v2331
        %2396 = vst [vmem:[#allocation2 + $0x20] sm:$0xff] %v2332
        %2397 = vst [vmem:[#allocation2 + $0x28] sm:$0xff] %v2333
        %2398 = vst [vmem:[#allocation2 + $0x30] sm:$0xff] %v2334
        %2399 = vst [vmem:[#allocation2 + $0x38] sm:$0xff] %v2335
        %2400 = vst [vmem:[#allocation2 + $0x40] sm:$0xff] %v2336
        %2401 = vst [vmem:[#allocation2 + $0x48] sm:$0xff] %v2337
        %2402 = vst [vmem:[#allocation2 + $0x50] sm:$0xff] %v2338
        %2403 = vst [vmem:[#allocation2 + $0x58] sm:$0xff] %v2339
        %2404 = vst [vmem:[#allocation2 + $0x60] sm:$0xff] %v2340
        %2405 = vst [vmem:[#allocation2 + $0x68] sm:$0xff] %v2341
        %2406 = vst [vmem:[#allocation2 + $0x70] sm:$0xff] %v2342
        %2407 = vst [vmem:[#allocation2 + $0x78] sm:$0xff] %v2343
        %2408 = vst [vmem:[#allocation2 + $0x80] sm:$0xff] %v2344
        %2409 = vst [vmem:[#allocation2 + $0x88] sm:$0xff] %v2345
        %2410 = vst [vmem:[#allocation2 + $0x90] sm:$0xff] %v2346
        %2411 = vst [vmem:[#allocation2 + $0x98] sm:$0xff] %v2347
        %2412 = vst [vmem:[#allocation2 + $0xa0] sm:$0xff] %v2348
        %2413 = vst [vmem:[#allocation2 + $0xa8] sm:$0xff] %v2349
        %2414 = vst [vmem:[#allocation2 + $0xb0] sm:$0xff] %v2350
        %2415 = vst [vmem:[#allocation2 + $0xb8] sm:$0xff] %v2351
        %2416 = vst [vmem:[#allocation2 + $0xc0] sm:$0xff] %v2352
        %2417 = vst [vmem:[#allocation2 + $0xc8] sm:$0xff] %v2353
        %2418 = vst [vmem:[#allocation2 + $0xd0] sm:$0xff] %v2354
        %2419 = vst [vmem:[#allocation2 + $0xd8] sm:$0xff] %v2355
        %2420 = vst [vmem:[#allocation2 + $0xe0] sm:$0xff] %v2356
        %2421 = vst [vmem:[#allocation2 + $0xe8] sm:$0xff] %v2357
        %2422 = vst [vmem:[#allocation2 + $0xf0] sm:$0xff] %v2358
        %2423 = vst [vmem:[#allocation2 + $0xf8] sm:$0xff] %v2359
        %2424 = vst [vmem:[#allocation2 + $0x100] sm:$0xff] %v2360
        %2425 = vst [vmem:[#allocation2 + $0x108] sm:$0xff] %v2361
        %2426 = vst [vmem:[#allocation2 + $0x110] sm:$0xff] %v2362
        %2427 = vst [vmem:[#allocation2 + $0x118] sm:$0xff] %v2363
        %2428 = vst [vmem:[#allocation2 + $0x120] sm:$0xff] %v2364
        %2429 = vst [vmem:[#allocation2 + $0x128] sm:$0xff] %v2365
        %2430 = vst [vmem:[#allocation2 + $0x130] sm:$0xff] %v2366
        %2431 = vst [vmem:[#allocation2 + $0x138] sm:$0xff] %v2367
        %2432 = vst [vmem:[#allocation2 + $0x140] sm:$0xff] %v2368
        %2433 = vst [vmem:[#allocation2 + $0x148] sm:$0xff] %v2369
        %2434 = vst [vmem:[#allocation2 + $0x150] sm:$0xff] %v2370
        %2435 = vst [vmem:[#allocation2 + $0x158] sm:$0xff] %v2371
        %2436 = vst [vmem:[#allocation2 + $0x160] sm:$0xff] %v2372
        %2437 = vst [vmem:[#allocation2 + $0x168] sm:$0xff] %v2373
        %2438 = vst [vmem:[#allocation2 + $0x170] sm:$0xff] %v2374
        %2439 = vst [vmem:[#allocation2 + $0x178] sm:$0xff] %v2375
        %2440 = vst [vmem:[#allocation2 + $0x180] sm:$0xff] %v2376
        %2441 = vst [vmem:[#allocation2 + $0x188] sm:$0xff] %v2377
        %2442 = vst [vmem:[#allocation2 + $0x190] sm:$0xff] %v2378
        %2443 = vst [vmem:[#allocation2 + $0x198] sm:$0xff] %v2379
        %2444 = vst [vmem:[#allocation2 + $0x1a0] sm:$0xff] %v2380
        %2445 = vst [vmem:[#allocation2 + $0x1a8] sm:$0xff] %v2381
        %2446 = vst [vmem:[#allocation2 + $0x1b0] sm:$0xff] %v2382
        %2447 = vst [vmem:[#allocation2 + $0x1b8] sm:$0xff] %v2383
        %2448 = vst [vmem:[#allocation2 + $0x1c0] sm:$0xff] %v2384
        %2449 = vst [vmem:[#allocation2 + $0x1c8] sm:$0xff] %v2385
        %2450 = vst [vmem:[#allocation2 + $0x1d0] sm:$0xff] %v2386
        %2451 = vst [vmem:[#allocation2 + $0x1d8] sm:$0xff] %v2387
        %2452 = vst [vmem:[#allocation2 + $0x1e0] sm:$0xff] %v2388
        %2453 = vst [vmem:[#allocation2 + $0x1e8] sm:$0xff] %v2389
        %2454 = vst [vmem:[#allocation2 + $0x1f0] sm:$0xff] %v2390
        %2455 = vst [vmem:[#allocation2 + $0x1f8] sm:$0xff] %v2391
        %p2456 = scmp.eq.s32.totalorder %s32, 3
        // Predicated region
        $region57: #{tpu_custom_call.1} parent=35 // pred_check
          %p2457 = pneg %p2456
        $region58: #{tpu_custom_call.1} parent=35 // pred_check_branch
          %2459 = sbr.rel (%p2457) target = $region60
        $region59: #{tpu_custom_call.1} parent=35 // pred_region
          %v2460 = vld [vmem:[#allocation2] sm:$0xff]
          %v2461 = vld [vmem:[#allocation2 + $0x8] sm:$0xff]
          %v2462 = vld [vmem:[#allocation2 + $0x10] sm:$0xff]
          %v2463 = vld [vmem:[#allocation2 + $0x18] sm:$0xff]
          %v2464 = vld [vmem:[#allocation2 + $0x20] sm:$0xff]
          %v2465 = vld [vmem:[#allocation2 + $0x28] sm:$0xff]
          %v2466 = vld [vmem:[#allocation2 + $0x30] sm:$0xff]
          %v2467 = vld [vmem:[#allocation2 + $0x38] sm:$0xff]
          %v2468 = vld [vmem:[#allocation2 + $0x40] sm:$0xff]
          %v2469 = vld [vmem:[#allocation2 + $0x48] sm:$0xff]
          %v2470 = vld [vmem:[#allocation2 + $0x50] sm:$0xff]
          %v2471 = vld [vmem:[#allocation2 + $0x58] sm:$0xff]
          %v2472 = vld [vmem:[#allocation2 + $0x60] sm:$0xff]
          %v2473 = vld [vmem:[#allocation2 + $0x68] sm:$0xff]
          %v2474 = vld [vmem:[#allocation2 + $0x70] sm:$0xff]
          %v2475 = vld [vmem:[#allocation2 + $0x78] sm:$0xff]
          %v2476 = vld [vmem:[#allocation2 + $0x80] sm:$0xff]
          %v2477 = vld [vmem:[#allocation2 + $0x88] sm:$0xff]
          %v2478 = vld [vmem:[#allocation2 + $0x90] sm:$0xff]
          %v2479 = vld [vmem:[#allocation2 + $0x98] sm:$0xff]
          %v2480 = vld [vmem:[#allocation2 + $0xa0] sm:$0xff]
          %v2481 = vld [vmem:[#allocation2 + $0xa8] sm:$0xff]
          %v2482 = vld [vmem:[#allocation2 + $0xb0] sm:$0xff]
          %v2483 = vld [vmem:[#allocation2 + $0xb8] sm:$0xff]
          %v2484 = vld [vmem:[#allocation2 + $0xc0] sm:$0xff]
          %v2485 = vld [vmem:[#allocation2 + $0xc8] sm:$0xff]
          %v2486 = vld [vmem:[#allocation2 + $0xd0] sm:$0xff]
          %v2487 = vld [vmem:[#allocation2 + $0xd8] sm:$0xff]
          %v2488 = vld [vmem:[#allocation2 + $0xe0] sm:$0xff]
          %v2489 = vld [vmem:[#allocation2 + $0xe8] sm:$0xff]
          %v2490 = vld [vmem:[#allocation2 + $0xf0] sm:$0xff]
          %v2491 = vld [vmem:[#allocation2 + $0xf8] sm:$0xff]
          %v2492 = vld [vmem:[#allocation2 + $0x100] sm:$0xff]
          %v2493 = vld [vmem:[#allocation2 + $0x108] sm:$0xff]
          %v2494 = vld [vmem:[#allocation2 + $0x110] sm:$0xff]
          %v2495 = vld [vmem:[#allocation2 + $0x118] sm:$0xff]
          %v2496 = vld [vmem:[#allocation2 + $0x120] sm:$0xff]
          %v2497 = vld [vmem:[#allocation2 + $0x128] sm:$0xff]
          %v2498 = vld [vmem:[#allocation2 + $0x130] sm:$0xff]
          %v2499 = vld [vmem:[#allocation2 + $0x138] sm:$0xff]
          %v2500 = vld [vmem:[#allocation2 + $0x140] sm:$0xff]
          %v2501 = vld [vmem:[#allocation2 + $0x148] sm:$0xff]
          %v2502 = vld [vmem:[#allocation2 + $0x150] sm:$0xff]
          %v2503 = vld [vmem:[#allocation2 + $0x158] sm:$0xff]
          %v2504 = vld [vmem:[#allocation2 + $0x160] sm:$0xff]
          %v2505 = vld [vmem:[#allocation2 + $0x168] sm:$0xff]
          %v2506 = vld [vmem:[#allocation2 + $0x170] sm:$0xff]
          %v2507 = vld [vmem:[#allocation2 + $0x178] sm:$0xff]
          %v2508 = vld [vmem:[#allocation2 + $0x180] sm:$0xff]
          %v2509 = vld [vmem:[#allocation2 + $0x188] sm:$0xff]
          %v2510 = vld [vmem:[#allocation2 + $0x190] sm:$0xff]
          %v2511 = vld [vmem:[#allocation2 + $0x198] sm:$0xff]
          %v2512 = vld [vmem:[#allocation2 + $0x1a0] sm:$0xff]
          %v2513 = vld [vmem:[#allocation2 + $0x1a8] sm:$0xff]
          %v2514 = vld [vmem:[#allocation2 + $0x1b0] sm:$0xff]
          %v2515 = vld [vmem:[#allocation2 + $0x1b8] sm:$0xff]
          %v2516 = vld [vmem:[#allocation2 + $0x1c0] sm:$0xff]
          %v2517 = vld [vmem:[#allocation2 + $0x1c8] sm:$0xff]
          %v2518 = vld [vmem:[#allocation2 + $0x1d0] sm:$0xff]
          %v2519 = vld [vmem:[#allocation2 + $0x1d8] sm:$0xff]
          %v2520 = vld [vmem:[#allocation2 + $0x1e0] sm:$0xff]
          %v2521 = vld [vmem:[#allocation2 + $0x1e8] sm:$0xff]
          %v2522 = vld [vmem:[#allocation2 + $0x1f0] sm:$0xff]
          %v2523 = vld [vmem:[#allocation2 + $0x1f8] sm:$0xff]
          %v2524 = vpack.c.bf16 %v2462, %v2460
          %v2525 = vpack.c.bf16 %v2463, %v2461
          %v2526 = vpack.c.bf16 %v2466, %v2464
          %v2527 = vpack.c.bf16 %v2467, %v2465
          %v2528 = vpack.c.bf16 %v2470, %v2468
          %v2529 = vpack.c.bf16 %v2471, %v2469
          %v2530 = vpack.c.bf16 %v2474, %v2472
          %v2531 = vpack.c.bf16 %v2475, %v2473
          %v2532 = vpack.c.bf16 %v2478, %v2476
          %v2533 = vpack.c.bf16 %v2479, %v2477
          %v2534 = vpack.c.bf16 %v2482, %v2480
          %v2535 = vpack.c.bf16 %v2483, %v2481
          %v2536 = vpack.c.bf16 %v2486, %v2484
          %v2537 = vpack.c.bf16 %v2487, %v2485
          %v2538 = vpack.c.bf16 %v2490, %v2488
          %v2539 = vpack.c.bf16 %v2491, %v2489
          %v2540 = vpack.c.bf16 %v2494, %v2492
          %v2541 = vpack.c.bf16 %v2495, %v2493
          %v2542 = vpack.c.bf16 %v2498, %v2496
          %v2543 = vpack.c.bf16 %v2499, %v2497
          %v2544 = vpack.c.bf16 %v2502, %v2500
          %v2545 = vpack.c.bf16 %v2503, %v2501
          %v2546 = vpack.c.bf16 %v2506, %v2504
          %v2547 = vpack.c.bf16 %v2507, %v2505
          %v2548 = vpack.c.bf16 %v2510, %v2508
          %v2549 = vpack.c.bf16 %v2511, %v2509
          %v2550 = vpack.c.bf16 %v2514, %v2512
          %v2551 = vpack.c.bf16 %v2515, %v2513
          %v2552 = vpack.c.bf16 %v2518, %v2516
          %v2553 = vpack.c.bf16 %v2519, %v2517
          %v2554 = vpack.c.bf16 %v2522, %v2520
          %v2555 = vpack.c.bf16 %v2523, %v2521
          %v2588 = vunpack.c.l.b16 %v2524
          %v2589 = vunpack.c.l.b16 %v2525
          %v2590 = vunpack.c.h.b16 %v2524
          %v2591 = vunpack.c.h.b16 %v2525
          %v2592 = vunpack.c.l.b16 %v2526
          %v2593 = vunpack.c.l.b16 %v2527
          %v2594 = vunpack.c.h.b16 %v2526
          %v2595 = vunpack.c.h.b16 %v2527
          %v2596 = vunpack.c.l.b16 %v2528
          %v2597 = vunpack.c.l.b16 %v2529
          %v2598 = vunpack.c.h.b16 %v2528
          %v2599 = vunpack.c.h.b16 %v2529
          %v2600 = vunpack.c.l.b16 %v2530
          %v2601 = vunpack.c.l.b16 %v2531
          %v2602 = vunpack.c.h.b16 %v2530
          %v2603 = vunpack.c.h.b16 %v2531
          %v2604 = vunpack.c.l.b16 %v2532
          %v2605 = vunpack.c.l.b16 %v2533
          %v2606 = vunpack.c.h.b16 %v2532
          %v2607 = vunpack.c.h.b16 %v2533
          %v2608 = vunpack.c.l.b16 %v2534
          %v2609 = vunpack.c.l.b16 %v2535
          %v2610 = vunpack.c.h.b16 %v2534
          %v2611 = vunpack.c.h.b16 %v2535
          %v2612 = vunpack.c.l.b16 %v2536
          %v2613 = vunpack.c.l.b16 %v2537
          %v2614 = vunpack.c.h.b16 %v2536
          %v2615 = vunpack.c.h.b16 %v2537
          %v2616 = vunpack.c.l.b16 %v2538
          %v2617 = vunpack.c.l.b16 %v2539
          %v2618 = vunpack.c.h.b16 %v2538
          %v2619 = vunpack.c.h.b16 %v2539
          %v2620 = vunpack.c.l.b16 %v2540
          %v2621 = vunpack.c.l.b16 %v2541
          %v2622 = vunpack.c.h.b16 %v2540
          %v2623 = vunpack.c.h.b16 %v2541
          %v2624 = vunpack.c.l.b16 %v2542
          %v2625 = vunpack.c.l.b16 %v2543
          %v2626 = vunpack.c.h.b16 %v2542
          %v2627 = vunpack.c.h.b16 %v2543
          %v2628 = vunpack.c.l.b16 %v2544
          %v2629 = vunpack.c.l.b16 %v2545
          %v2630 = vunpack.c.h.b16 %v2544
          %v2631 = vunpack.c.h.b16 %v2545
          %v2632 = vunpack.c.l.b16 %v2546
          %v2633 = vunpack.c.l.b16 %v2547
          %v2634 = vunpack.c.h.b16 %v2546
          %v2635 = vunpack.c.h.b16 %v2547
          %v2636 = vunpack.c.l.b16 %v2548
          %v2637 = vunpack.c.l.b16 %v2549
          %v2638 = vunpack.c.h.b16 %v2548
          %v2639 = vunpack.c.h.b16 %v2549
          %v2640 = vunpack.c.l.b16 %v2550
          %v2641 = vunpack.c.l.b16 %v2551
          %v2642 = vunpack.c.h.b16 %v2550
          %v2643 = vunpack.c.h.b16 %v2551
          %v2644 = vunpack.c.l.b16 %v2552
          %v2645 = vunpack.c.l.b16 %v2553
          %v2646 = vunpack.c.h.b16 %v2552
          %v2647 = vunpack.c.h.b16 %v2553
          %v2648 = vunpack.c.l.b16 %v2554
          %v2649 = vunpack.c.l.b16 %v2555
          %v2650 = vunpack.c.h.b16 %v2554
          %v2651 = vunpack.c.h.b16 %v2555
          %v2652 = vpack.c.b16 %v2589, %v2588
          %v2653 = vpack.c.b16 %v2591, %v2590
          %v2654 = vpack.c.b16 %v2593, %v2592
          %v2655 = vpack.c.b16 %v2595, %v2594
          %v2656 = vpack.c.b16 %v2597, %v2596
          %v2657 = vpack.c.b16 %v2599, %v2598
          %v2658 = vpack.c.b16 %v2601, %v2600
          %v2659 = vpack.c.b16 %v2603, %v2602
          %v2660 = vpack.c.b16 %v2605, %v2604
          %v2661 = vpack.c.b16 %v2607, %v2606
          %v2662 = vpack.c.b16 %v2609, %v2608
          %v2663 = vpack.c.b16 %v2611, %v2610
          %v2664 = vpack.c.b16 %v2613, %v2612
          %v2665 = vpack.c.b16 %v2615, %v2614
          %v2666 = vpack.c.b16 %v2617, %v2616
          %v2667 = vpack.c.b16 %v2619, %v2618
          %v2668 = vpack.c.b16 %v2621, %v2620
          %v2669 = vpack.c.b16 %v2623, %v2622
          %v2670 = vpack.c.b16 %v2625, %v2624
          %v2671 = vpack.c.b16 %v2627, %v2626
          %v2672 = vpack.c.b16 %v2629, %v2628
          %v2673 = vpack.c.b16 %v2631, %v2630
          %v2674 = vpack.c.b16 %v2633, %v2632
          %v2675 = vpack.c.b16 %v2635, %v2634
          %v2676 = vpack.c.b16 %v2637, %v2636
          %v2677 = vpack.c.b16 %v2639, %v2638
          %v2678 = vpack.c.b16 %v2641, %v2640
          %v2679 = vpack.c.b16 %v2643, %v2642
          %v2680 = vpack.c.b16 %v2645, %v2644
          %v2681 = vpack.c.b16 %v2647, %v2646
          %v2682 = vpack.c.b16 %v2649, %v2648
          %v2683 = vpack.c.b16 %v2651, %v2650
          %2716 = vst [vmem:[%s353] sm:$0xff] %v2652
          %2717 = vst [vmem:[%s353 + $0x8] sm:$0xff] %v2653
          %2718 = vst [vmem:[%s353 + $0x10] sm:$0xff] %v2654
          %2719 = vst [vmem:[%s353 + $0x18] sm:$0xff] %v2655
          %2720 = vst [vmem:[%s353 + $0x20] sm:$0xff] %v2656
          %2721 = vst [vmem:[%s353 + $0x28] sm:$0xff] %v2657
          %2722 = vst [vmem:[%s353 + $0x30] sm:$0xff] %v2658
          %2723 = vst [vmem:[%s353 + $0x38] sm:$0xff] %v2659
          %2724 = vst [vmem:[%s353 + $0x40] sm:$0xff] %v2660
          %2725 = vst [vmem:[%s353 + $0x48] sm:$0xff] %v2661
          %2726 = vst [vmem:[%s353 + $0x50] sm:$0xff] %v2662
          %2727 = vst [vmem:[%s353 + $0x58] sm:$0xff] %v2663
          %2728 = vst [vmem:[%s353 + $0x60] sm:$0xff] %v2664
          %2729 = vst [vmem:[%s353 + $0x68] sm:$0xff] %v2665
          %2730 = vst [vmem:[%s353 + $0x70] sm:$0xff] %v2666
          %2731 = vst [vmem:[%s353 + $0x78] sm:$0xff] %v2667
          %2732 = vst [vmem:[%s353 + $0x80] sm:$0xff] %v2668
          %2733 = vst [vmem:[%s353 + $0x88] sm:$0xff] %v2669
          %2734 = vst [vmem:[%s353 + $0x90] sm:$0xff] %v2670
          %2735 = vst [vmem:[%s353 + $0x98] sm:$0xff] %v2671
          %2736 = vst [vmem:[%s353 + $0xa0] sm:$0xff] %v2672
          %2737 = vst [vmem:[%s353 + $0xa8] sm:$0xff] %v2673
          %2738 = vst [vmem:[%s353 + $0xb0] sm:$0xff] %v2674
          %2739 = vst [vmem:[%s353 + $0xb8] sm:$0xff] %v2675
          %2740 = vst [vmem:[%s353 + $0xc0] sm:$0xff] %v2676
          %2741 = vst [vmem:[%s353 + $0xc8] sm:$0xff] %v2677
          %2742 = vst [vmem:[%s353 + $0xd0] sm:$0xff] %v2678
          %2743 = vst [vmem:[%s353 + $0xd8] sm:$0xff] %v2679
          %2744 = vst [vmem:[%s353 + $0xe0] sm:$0xff] %v2680
          %2745 = vst [vmem:[%s353 + $0xe8] sm:$0xff] %v2681
          %2746 = vst [vmem:[%s353 + $0xf0] sm:$0xff] %v2682
          %2747 = vst [vmem:[%s353 + $0xf8] sm:$0xff] %v2683
        $region60: #{tpu_custom_call.1} parent=35 // pred_fallthru
          _
        %s2748 = sand.u32 %s151, 1
        %s2749 = scalar_lea.sflag [#allocation5], %s2748
        %s2750 = sand.u32 %s151, 1
        %s2751 = smul.addr %s2750, 256
        %s2752 = scalar_lea.vmem [#allocation11], %s2751
        // Predicated region
        $region61: #{tpu_custom_call.1} parent=35 // pred_check
          %p2753 = pneg %p161
        $region62: #{tpu_custom_call.1} parent=35 // pred_check_branch
          %2755 = sbr.rel (%p2753) target = $region64
        $region63: #{tpu_custom_call.1} parent=35 // pred_region
          %s2756 = smul.u32 32, %s31
          %s2757 = ssub.s32 63, %s2756
          %p2758 = scmp.lt.s32.totalorder %s2757, 32
          %s2759 = scalar_select %p2758, %s2757, 32
          %s2760 = smul.u32 64, %s2759
          %s2761 = smul.u32 %s2760, 2
          %s2763 = ssub.s32 4096, %s2761
          %2764 = vsyncadd %s2749, %s2763
          %p2765 = scmp.ne.s32.totalorder 0, %s2761
          %s2766 = smul.addr %s2756, 2
          %s2767 = smul.addr %s2766, 64
          %s2768 = scalar_lea.hbm %s4, %s2767
          %s2769 = smul.u32 8, %s2759
          %s2770 = sshll.u32 %s2752, 4
          %s2771 = int_to_ptr.vmem [resolvable:$true] %s2770
          %s2772 = sshll.u32 %s2769, 4
          %2776 = dma.vmem_to_hbm [thread:$0]  (%p2765), %s2771, %s2772, %s2768, %s2749, 128, 128, 8
        $region64: #{tpu_custom_call.1} parent=35 // pred_fallthru
          _
      $region36: #{tpu_custom_call.1} parent=5 // pred_fallthru
        _
      %p2777 = scmp.le.s32.totalorder 2, %s22
      // Predicated region
      $region65: #{tpu_custom_call.1} parent=5 // pred_check
        %p2778 = pneg %p2777
      $region66: #{tpu_custom_call.1} parent=5 // pred_check_branch
        %2780 = sbr.rel (%p2778) target = $region68
      $region67: #{tpu_custom_call.1} parent=5 // pred_region
        %s2781 = ssub.s32 %s22, 2
        // Predicated region
        $region69: #{tpu_custom_call.1} parent=67 // pred_check
          %p2782 = pneg %p167
        $region70: #{tpu_custom_call.1} parent=67 // pred_check_branch
          %2784 = sbr.rel (%p2782) target = $region72
        $region71: #{tpu_custom_call.1} parent=67 // pred_region
          %s2785 = sand.u32 %s152, 1
          %s2786 = scalar_lea.sflag [#allocation5], %s2785
          %s2787 = sand.u32 %s152, 1
          %s2788 = smul.addr %s2787, 256
          %s2789 = scalar_lea.vmem [#allocation11], %s2788
          %2790 = dma.done %s2786, 4096
        $region72: #{tpu_custom_call.1} parent=67 // pred_fallthru
          _
      $region68: #{tpu_custom_call.1} parent=5 // pred_fallthru
        _
    $region6: #{tpu_custom_call.1} parent=1 // loop_footer
      %s26 = sadd.s32 1, %s22
    $region7: #{tpu_custom_call.1} parent=1 // loop_footer_branch
      %21 = sbr.rel target = $region3
    $region8: #{tpu_custom_call.1} parent=1 // loop_exit
      _
    %2791 = vsyncpa [#allocation4], 1
    %s2792 = scalar_lea.sflag [#allocation4], 1
    %2793 = vsyncpa %s2792, 1
    %2794 = vsyncpa [#allocation7], 1
    %s2795 = scalar_lea.sflag [#allocation7], 1
    %2796 = vsyncpa %s2795, 1
    %2797 = vsyncpa [#allocation10], 1
    %s2798 = scalar_lea.sflag [#allocation10], 1
    %2799 = vsyncpa %s2798, 1
    %2800 = vsyncpa [#allocation5], 1
    %s2801 = scalar_lea.sflag [#allocation5], 1
    %2802 = vsyncpa %s2801, 1

</llo_original>
